<compile_context>
chip_gen: v7x
topology: tpu7x:2x2x1
jax: 0.10.0
libtpu: 0.0.40
codegen_flags: <defaults>
</compile_context>

<pallas_src>
import functools
import math

import jax
import jax.numpy as jnp
from jax.experimental import pallas as pl
from jax.experimental.pallas import tpu as pltpu

_INV_SQRT2 = 1.0 / math.sqrt(2.0)
_BN_EPS = 1e-5


def _gelu_exact(y):
    return 0.5 * y * (1.0 + jax.lax.erf(y * _INV_SQRT2))


# ----------------------------------------------------------------------------
# Kernel A: conv3x3 (single im2col matmul) + fused PixelShuffle store + BN
# partial statistics.  One grid step processes a block of `bn` images.
# ----------------------------------------------------------------------------
def _conv_ps_stats_kernel(x_ref, w_ref, up_ref, sum_ref, sq_ref, pad_ref):
    bn, H, W, Cin = x_ref.shape
    Cout = w_ref.shape[1]
    strds = up_ref.shape[2]
    group = up_ref.shape[4]            # strds * Cps (channels of one dy-row)

    # Fold the "same" zero-padding into the kernel (no HBM-level jnp.pad).
    # Full zero-fill every step keeps the border correct under megacore grid
    # splitting; the buffer is tiny so this is negligible.
    pad_ref[...] = jnp.zeros_like(pad_ref)
    pad_ref[:, 1:H + 1, 1:W + 1, :] = x_ref[...]

    # im2col built directly in bf16 (cast each shifted patch before concat),
    # then a single (M, 9*Cin) @ (9*Cin, Cout) MXU matmul with M = bn*H*W
    # collapsed into the matmul rows; bf16 operands, f32 accumulation.
    patches = [pad_ref[:, ky:ky + H, kx:kx + W, :].astype(jnp.bfloat16)
               for ky in range(3) for kx in range(3)]
    col = jnp.concatenate(patches, axis=-1).reshape(bn * H * W, 9 * Cin)
    acc = jnp.dot(col, w_ref[...],
                  preferred_element_type=jnp.float32)          # (M, Cout) f32

    # BatchNorm batch-statistics partials fused into the conv epilogue.
    sum_ref[...] = jnp.sum(acc, axis=0, keepdims=True).reshape(1, 1, Cout)
    sq_ref[...] = jnp.sum(acc * acc, axis=0, keepdims=True).reshape(1, 1, Cout)

    # PixelShuffle fused into the output store: with the (dy, dx, cps) channel
    # permutation applied to the weights, each dy half of the channel axis is
    # a contiguous slice and lands at up_ref[:, :, dy, :, :].
    acc = acc.reshape(bn, H, W, Cout)
    for dy in range(strds):
        up_ref[:, :, dy, :, :] = acc[:, :, :, dy * group:(dy + 1) * group]


# ----------------------------------------------------------------------------
# Kernel B: apply BatchNorm (precomputed scale/shift) + exact GELU and emit the
# final NCHW layout (channels major, flattened spatial axis lane-dense).
# ----------------------------------------------------------------------------
def _bn_gelu_to_nchw_kernel(x_ref, scale_ref, shift_ref, o_ref):
    y = x_ref[...] * scale_ref[...] + shift_ref[...]           # (bn, S, Cps)
    y = _gelu_exact(y)
    for i in range(x_ref.shape[0]):                            # channel-minor ->
        o_ref[i] = y[i].T                                      # channel-major


def _pick_block_n(n, hw, target_m=512):
    """Largest divisor of n whose matmul M = bn*hw stays moderate, while
    keeping >= 2 grid steps on the parallel axis when possible (megacore)."""
    divs = [d for d in range(1, n + 1) if n % d == 0]
    fit = [d for d in divs if d * hw <= target_m]
    bn = max(fit) if fit else 1
    if n // bn < 2:
        two = [d for d in divs if n // d >= 2]
        if two:
            bn = max(two)
    return bn


@functools.partial(jax.jit, static_argnames=("strds", "r"))
def upsample_forward(x5, w_hwio, gamma, beta, strds=2, r=2):
    """x5: (b, f, c, h, w) -> (b, f, c//r, h*strds, w*strds)."""
    b, f, c, h, w = x5.shape
    N = b * f
    Cin = c
    Cps = c // r
    Cout = Cps * strds * strds
    S = h * strds * w * strds

    # NCHW -> NHWC once; all remaining layout work happens inside the kernels.
    x = jnp.transpose(x5.reshape(N, c, h, w), (0, 2, 3, 1))

    # Permute conv output channels to (dy, dx, cps) order so PixelShuffle
    # becomes contiguous channel-slice stores; flatten taps to the im2col
    # column order ((ky,kx,ci)).  bf16 for the MXU.
    perm = [cps * strds * strds + dy * strds + dx
            for dy in range(strds) for dx in range(strds) for cps in range(Cps)]
    w2 = (w_hwio[..., jnp.asarray(perm)]
          .reshape(9 * Cin, Cout).astype(jnp.bfloat16))

    bn = _pick_block_n(N, h * w)
    G = N // bn

    comp = pltpu.CompilerParams(dimension_semantics=("parallel",),
                                vmem_limit_bytes=32 * 1024 * 1024)

    conv_flops = 2 * N * h * w * (9 * Cin) * Cout
    conv_bytes = (x.size * 4 + w2.size * 2
                  + N * h * w * Cout * 4 + 2 * G * Cout * 4)
    up_flat, psum, psq = pl.pallas_call(
        _conv_ps_stats_kernel,
        out_shape=(
            jax.ShapeDtypeStruct((N, h, strds, w, strds * Cps), jnp.float32),
            jax.ShapeDtypeStruct((G, 1, Cout), jnp.float32),
            jax.ShapeDtypeStruct((G, 1, Cout), jnp.float32),
        ),
        grid=(G,),
        in_specs=[
            pl.BlockSpec((bn, h, w, Cin), lambda g: (g, 0, 0, 0)),
            pl.BlockSpec((9 * Cin, Cout), lambda g: (0, 0)),
        ],
        out_specs=(
            pl.BlockSpec((bn, h, strds, w, strds * Cps),
                         lambda g: (g, 0, 0, 0, 0)),
            pl.BlockSpec((1, 1, Cout), lambda g: (g, 0, 0)),
            pl.BlockSpec((1, 1, Cout), lambda g: (g, 0, 0)),
        ),
        scratch_shapes=[pltpu.VMEM((bn, h + 2, w + 2, Cin), jnp.float32)],
        compiler_params=comp,
        cost_estimate=pl.CostEstimate(flops=int(conv_flops),
                                      transcendentals=0,
                                      bytes_accessed=int(conv_bytes)),
    )(x, w2)

    # Finalize BN batch statistics (training semantics, biased variance):
    # fold per-block partials and the strds^2 shuffle groups per channel.
    count = N * h * w * strds * strds
    tot = psum.reshape(G, Cout).sum(axis=0).reshape(strds * strds, Cps).sum(0)
    totsq = psq.reshape(G, Cout).sum(axis=0).reshape(strds * strds, Cps).sum(0)
    mean = tot / count
    var = totsq / count - mean * mean
    scale = gamma * jax.lax.rsqrt(var + _BN_EPS)
    shift = beta - mean * scale

    # (N, h, s, w, s*Cps) is bit-identical to the shuffled NHWC tensor
    # (N, s*h, s*w, Cps); view it as (N, S, Cps) — free reshape, no HBM pass.
    x_up = up_flat.reshape(N, S, Cps)

    bngelu_flops = 4 * N * S * Cps
    bngelu_bytes = 2 * N * S * Cps * 4 + 2 * Cps * 4
    out = pl.pallas_call(
        _bn_gelu_to_nchw_kernel,
        out_shape=jax.ShapeDtypeStruct((N, Cps, S), jnp.float32),
        grid=(G,),
        in_specs=[
            pl.BlockSpec((bn, S, Cps), lambda g: (g, 0, 0)),
            pl.BlockSpec((1, 1, Cps), lambda g: (0, 0, 0)),
            pl.BlockSpec((1, 1, Cps), lambda g: (0, 0, 0)),
        ],
        out_specs=pl.BlockSpec((bn, Cps, S), lambda g: (g, 0, 0)),
        compiler_params=comp,
        cost_estimate=pl.CostEstimate(flops=int(bngelu_flops),
                                      transcendentals=int(N * S * Cps),
                                      bytes_accessed=int(bngelu_bytes)),
    )(x_up, scale.reshape(1, 1, Cps), shift.reshape(1, 1, Cps))

    return out.reshape(b, f, Cps, h * strds, w * strds)


# ----------------------------------------------------------------------------
# Independent pure-JAX reference (PixelShuffle done with PyTorch's NCHW
# semantics, i.e. not sharing the kernel-side shuffle trick).
# ----------------------------------------------------------------------------
def upsample_reference(x5, w_hwio, gamma, beta, strds=2, r=2):
    b, f, c, h, w = x5.shape
    N = b * f
    Cps = c // r
    x = jnp.transpose(x5.reshape(N, c, h, w), (0, 2, 3, 1))
    y = jax.lax.conv_general_dilated(
        x, w_hwio, (1, 1), "SAME",
        dimension_numbers=("NHWC", "HWIO", "NHWC"))            # (N, h, w, Cout)
    y = jnp.transpose(y, (0, 3, 1, 2))                         # (N, Cout, h, w)
    y = y.reshape(N, Cps, strds, strds, h, w)
    y = jnp.transpose(y, (0, 1, 4, 2, 5, 3))                   # (N,Cps,h,s,w,s)
    y = y.reshape(N, Cps, h * strds, w * strds)
    mean = y.mean(axis=(0, 2, 3), keepdims=True)
    var = jnp.mean(jnp.square(y - mean), axis=(0, 2, 3), keepdims=True)
    y = (y - mean) * jax.lax.rsqrt(var + _BN_EPS) * gamma.reshape(1, -1, 1, 1) \
        + beta.reshape(1, -1, 1, 1)
    y = _gelu_exact(y)
    return y.reshape(b, f, Cps, h * strds, w * strds)


if __name__ == "__main__":
    # UpSample(dim=8, strds=2, r=2) on a small deterministic input.
    b, f, c, h, w = 2, 2, 8, 8, 8
    strds, r = 2, 2
    c_out = c // r * strds ** 2        # conv output channels = 16
    c_ps = c // r                      # channels after pixel shuffle = 4

    key = jax.random.PRNGKey(0)
    kx, kw = jax.random.split(key)
    x5 = jax.random.normal(kx, (b, f, c, h, w), dtype=jnp.float32)
    w_hwio = 0.05 * jax.random.normal(kw, (3, 3, c, c_out), dtype=jnp.float32)
    gamma = 1.0 + 0.1 * jnp.arange(c_ps, dtype=jnp.float32)
    beta = 0.02 * jnp.arange(c_ps, dtype=jnp.float32) - 0.03

    out = jax.block_until_ready(
        upsample_forward(x5, w_hwio, gamma, beta, strds=strds, r=r))
    ref = jax.block_until_ready(
        upsample_reference(x5, w_hwio, gamma, beta, strds=strds, r=r))

    assert out.shape == (b, f, c_ps, h * strds, w * strds), out.shape
    err = float(jnp.max(jnp.abs(out - ref)))
    # bf16 MXU operands vs. the all-f32 reference conv -> allow a few e-3 slack.
    assert err < 3e-2, err

    print("KERNEL_OK")
</pallas_src>

<mosaic_0001>
module attributes {stable_mosaic.version = 11 : i64} {
  func.func @_conv_ps_stats_kernel(%arg0: i32, %arg1: memref<2x8x8x8xf32, #tpu.memory_space<vmem>>, %arg2: memref<72x16xbf16, #tpu.memory_space<vmem>>, %arg3: memref<2x8x2x8x8xf32, #tpu.memory_space<vmem>>, %arg4: memref<1x1x16xf32, #tpu.memory_space<vmem>>, %arg5: memref<1x1x16xf32, #tpu.memory_space<vmem>>, %arg6: memref<2x10x10x8xf32, #tpu.memory_space<vmem>>) attributes {dimension_semantics = [#tpu.dimension_semantics<parallel>], iteration_bounds = array<i64: 2>, scalar_prefetch = 0 : i64, scratch_operands = 1 : i64, tpu.core_type = #tpu.core_type<tc>, window_params = [{transform_indices = @transform_0, window_bounds = array<i64: 2, 8, 8, 8>}, {pipeline_mode = #tpu.pipeline_mode<synchronous>, transform_indices = @transform_1, window_bounds = array<i64: 72, 16>}, {transform_indices = @transform_2, window_bounds = array<i64: 2, 8, 2, 8, 8>}, {transform_indices = @transform_3, window_bounds = array<i64: 1, 1, 16>}, {transform_indices = @transform_4, window_bounds = array<i64: 1, 1, 16>}]} {
    %cst = arith.constant 0.000000e+00 : f32
    %0 = vector.broadcast %cst : f32 to vector<2x10x10x8xf32>
    %c0 = arith.constant 0 : index
    %c0_0 = arith.constant 0 : index
    %c0_1 = arith.constant 0 : index
    %c0_2 = arith.constant 0 : index
    %1 = vector.load %arg6[%c0, %c0_0, %c0_1, %c0_2] : memref<2x10x10x8xf32, #tpu.memory_space<vmem>>, vector<2x10x10x8xf32>
    tpu.vector_store %arg6[%c0, %c0_0, %c0_1, %c0_2], %0 {strides = array<i32>} : memref<2x10x10x8xf32, #tpu.memory_space<vmem>>, vector<2x10x10x8xf32>,
    %c0_3 = arith.constant 0 : index
    %c0_4 = arith.constant 0 : index
    %c0_5 = arith.constant 0 : index
    %c0_6 = arith.constant 0 : index
    %2 = vector.load %arg1[%c0_3, %c0_4, %c0_5, %c0_6] : memref<2x8x8x8xf32, #tpu.memory_space<vmem>>, vector<2x8x8x8xf32>
    %c0_7 = arith.constant 0 : index
    %c1 = arith.constant 1 : index
    %c1_8 = arith.constant 1 : index
    %c0_9 = arith.constant 0 : index
    %3 = vector.load %arg6[%c0_7, %c1, %c1_8, %c0_9] : memref<2x10x10x8xf32, #tpu.memory_space<vmem>>, vector<2x8x8x8xf32>
    tpu.vector_store %arg6[%c0_7, %c1, %c1_8, %c0_9], %2 {strides = array<i32>} : memref<2x10x10x8xf32, #tpu.memory_space<vmem>>, vector<2x8x8x8xf32>,
    %c0_10 = arith.constant 0 : index
    %c0_11 = arith.constant 0 : index
    %c0_12 = arith.constant 0 : index
    %c0_13 = arith.constant 0 : index
    %4 = vector.load %arg6[%c0_10, %c0_11, %c0_12, %c0_13] : memref<2x10x10x8xf32, #tpu.memory_space<vmem>>, vector<2x8x8x8xf32>
    %5 = arith.truncf %4 : vector<2x8x8x8xf32> to vector<2x8x8x8xbf16>
    %c0_14 = arith.constant 0 : index
    %c0_15 = arith.constant 0 : index
    %c1_16 = arith.constant 1 : index
    %c0_17 = arith.constant 0 : index
    %6 = vector.load %arg6[%c0_14, %c0_15, %c1_16, %c0_17] : memref<2x10x10x8xf32, #tpu.memory_space<vmem>>, vector<2x8x8x8xf32>
    %7 = arith.truncf %6 : vector<2x8x8x8xf32> to vector<2x8x8x8xbf16>
    %c0_18 = arith.constant 0 : index
    %c0_19 = arith.constant 0 : index
    %c2 = arith.constant 2 : index
    %c0_20 = arith.constant 0 : index
    %8 = vector.load %arg6[%c0_18, %c0_19, %c2, %c0_20] : memref<2x10x10x8xf32, #tpu.memory_space<vmem>>, vector<2x8x8x8xf32>
    %9 = arith.truncf %8 : vector<2x8x8x8xf32> to vector<2x8x8x8xbf16>
    %c0_21 = arith.constant 0 : index
    %c1_22 = arith.constant 1 : index
    %c0_23 = arith.constant 0 : index
    %c0_24 = arith.constant 0 : index
    %10 = vector.load %arg6[%c0_21, %c1_22, %c0_23, %c0_24] : memref<2x10x10x8xf32, #tpu.memory_space<vmem>>, vector<2x8x8x8xf32>
    %11 = arith.truncf %10 : vector<2x8x8x8xf32> to vector<2x8x8x8xbf16>
    %c0_25 = arith.constant 0 : index
    %c1_26 = arith.constant 1 : index
    %c1_27 = arith.constant 1 : index
    %c0_28 = arith.constant 0 : index
    %12 = vector.load %arg6[%c0_25, %c1_26, %c1_27, %c0_28] : memref<2x10x10x8xf32, #tpu.memory_space<vmem>>, vector<2x8x8x8xf32>
    %13 = arith.truncf %12 : vector<2x8x8x8xf32> to vector<2x8x8x8xbf16>
    %c0_29 = arith.constant 0 : index
    %c1_30 = arith.constant 1 : index
    %c2_31 = arith.constant 2 : index
    %c0_32 = arith.constant 0 : index
    %14 = vector.load %arg6[%c0_29, %c1_30, %c2_31, %c0_32] : memref<2x10x10x8xf32, #tpu.memory_space<vmem>>, vector<2x8x8x8xf32>
    %15 = arith.truncf %14 : vector<2x8x8x8xf32> to vector<2x8x8x8xbf16>
    %c0_33 = arith.constant 0 : index
    %c2_34 = arith.constant 2 : index
    %c0_35 = arith.constant 0 : index
    %c0_36 = arith.constant 0 : index
    %16 = vector.load %arg6[%c0_33, %c2_34, %c0_35, %c0_36] : memref<2x10x10x8xf32, #tpu.memory_space<vmem>>, vector<2x8x8x8xf32>
    %17 = arith.truncf %16 : vector<2x8x8x8xf32> to vector<2x8x8x8xbf16>
    %c0_37 = arith.constant 0 : index
    %c2_38 = arith.constant 2 : index
    %c1_39 = arith.constant 1 : index
    %c0_40 = arith.constant 0 : index
    %18 = vector.load %arg6[%c0_37, %c2_38, %c1_39, %c0_40] : memref<2x10x10x8xf32, #tpu.memory_space<vmem>>, vector<2x8x8x8xf32>
    %19 = arith.truncf %18 : vector<2x8x8x8xf32> to vector<2x8x8x8xbf16>
    %c0_41 = arith.constant 0 : index
    %c2_42 = arith.constant 2 : index
    %c2_43 = arith.constant 2 : index
    %c0_44 = arith.constant 0 : index
    %20 = vector.load %arg6[%c0_41, %c2_42, %c2_43, %c0_44] : memref<2x10x10x8xf32, #tpu.memory_space<vmem>>, vector<2x8x8x8xf32>
    %21 = arith.truncf %20 : vector<2x8x8x8xf32> to vector<2x8x8x8xbf16>
    %22 = tpu.concatenate %5, %7, %9, %11, %13, %15, %17, %19, %21 in 3 : vector<2x8x8x8xbf16>, vector<2x8x8x8xbf16>, vector<2x8x8x8xbf16>, vector<2x8x8x8xbf16>, vector<2x8x8x8xbf16>, vector<2x8x8x8xbf16>, vector<2x8x8x8xbf16>, vector<2x8x8x8xbf16>, vector<2x8x8x8xbf16> -> vector<2x8x8x72xbf16>
    %23 = vector.shape_cast %22 : vector<2x8x8x72xbf16> to vector<128x72xbf16>
    %c0_45 = arith.constant 0 : index
    %c0_46 = arith.constant 0 : index
    %24 = vector.load %arg2[%c0_45, %c0_46] : memref<72x16xbf16, #tpu.memory_space<vmem>>, vector<72x16xbf16>
    %cst_47 = arith.constant dense<0.000000e+00> : vector<128x16xf32>
    %25 = tpu.matmul %23, %24, %cst_47 {dimension_numbers = #tpu.dot_dimension_numbers<[1], [0], [0], [1], [0, 0, 1, 1], [], []>} : vector<128x72xbf16>, vector<72x16xbf16>, vector<128x16xf32> -> vector<128x16xf32>
    %cst_48 = arith.constant dense<0.000000e+00> : vector<16xf32>
    %26 = vector.multi_reduction <add>, %25, %cst_48 [0] : vector<128x16xf32> to vector<16xf32>
    %27 = vector.shape_cast %26 : vector<16xf32> to vector<1x16xf32>
    %28 = vector.shape_cast %27 : vector<1x16xf32> to vector<1x1x16xf32>
    %c0_49 = arith.constant 0 : index
    %c0_50 = arith.constant 0 : index
    %c0_51 = arith.constant 0 : index
    %29 = vector.load %arg4[%c0_49, %c0_50, %c0_51] : memref<1x1x16xf32, #tpu.memory_space<vmem>>, vector<1x1x16xf32>
    tpu.vector_store %arg4[%c0_49, %c0_50, %c0_51], %28 {strides = array<i32>} : memref<1x1x16xf32, #tpu.memory_space<vmem>>, vector<1x1x16xf32>,
    %30 = arith.mulf %25, %25 : vector<128x16xf32>
    %cst_52 = arith.constant dense<0.000000e+00> : vector<16xf32>
    %31 = vector.multi_reduction <add>, %30, %cst_52 [0] : vector<128x16xf32> to vector<16xf32>
    %32 = vector.shape_cast %31 : vector<16xf32> to vector<1x16xf32>
    %33 = vector.shape_cast %32 : vector<1x16xf32> to vector<1x1x16xf32>
    %c0_53 = arith.constant 0 : index
    %c0_54 = arith.constant 0 : index
    %c0_55 = arith.constant 0 : index
    %34 = vector.load %arg5[%c0_53, %c0_54, %c0_55] : memref<1x1x16xf32, #tpu.memory_space<vmem>>, vector<1x1x16xf32>
    tpu.vector_store %arg5[%c0_53, %c0_54, %c0_55], %33 {strides = array<i32>} : memref<1x1x16xf32, #tpu.memory_space<vmem>>, vector<1x1x16xf32>,
    %35 = vector.shape_cast %25 : vector<128x16xf32> to vector<2x8x8x16xf32>
    %36 = vector.extract_strided_slice %35 {offsets = [0, 0, 0, 0], sizes = [2, 8, 8, 8], strides = [1, 1, 1, 1]} : vector<2x8x8x16xf32> to vector<2x8x8x8xf32>
    %c0_56 = arith.constant 0 : index
    %c0_57 = arith.constant 0 : index
    %c0_58 = arith.constant 0 : index
    %c0_59 = arith.constant 0 : index
    %c0_60 = arith.constant 0 : index
    %37 = vector.load %arg3[%c0_56, %c0_57, %c0_58, %c0_59, %c0_60] : memref<2x8x2x8x8xf32, #tpu.memory_space<vmem>>, vector<2x8x1x8x8xf32>
    %38 = vector.shape_cast %37 : vector<2x8x1x8x8xf32> to vector<2x8x8x8xf32>
    %39 = vector.shape_cast %36 : vector<2x8x8x8xf32> to vector<2x8x1x8x8xf32>
    tpu.vector_store %arg3[%c0_56, %c0_57, %c0_58, %c0_59, %c0_60], %39 {strides = array<i32>} : memref<2x8x2x8x8xf32, #tpu.memory_space<vmem>>, vector<2x8x1x8x8xf32>,
    %40 = vector.extract_strided_slice %35 {offsets = [0, 0, 0, 8], sizes = [2, 8, 8, 8], strides = [1, 1, 1, 1]} : vector<2x8x8x16xf32> to vector<2x8x8x8xf32>
    %c0_61 = arith.constant 0 : index
    %c0_62 = arith.constant 0 : index
    %c1_63 = arith.constant 1 : index
    %c0_64 = arith.constant 0 : index
    %c0_65 = arith.constant 0 : index
    %41 = vector.load %arg3[%c0_61, %c0_62, %c1_63, %c0_64, %c0_65] : memref<2x8x2x8x8xf32, #tpu.memory_space<vmem>>, vector<2x8x1x8x8xf32>
    %42 = vector.shape_cast %41 : vector<2x8x1x8x8xf32> to vector<2x8x8x8xf32>
    %43 = vector.shape_cast %40 : vector<2x8x8x8xf32> to vector<2x8x1x8x8xf32>
    tpu.vector_store %arg3[%c0_61, %c0_62, %c1_63, %c0_64, %c0_65], %43 {strides = array<i32>} : memref<2x8x2x8x8xf32, #tpu.memory_space<vmem>>, vector<2x8x1x8x8xf32>,
    return
  }
  func.func @transform_0(%arg0: i32) -> (i32, i32, i32, i32) {
    %c0_i32 = arith.constant 0 : i32
    %c0_i32_0 = arith.constant 0 : i32
    %c0_i32_1 = arith.constant 0 : i32
    %c0_i32_2 = arith.constant 0 : i32
    return %arg0, %c0_i32, %c0_i32_0, %c0_i32_1 : i32, i32, i32, i32
  }
  func.func @transform_1(%arg0: i32) -> (i32, i32) {
    %c0_i32 = arith.constant 0 : i32
    %c0_i32_0 = arith.constant 0 : i32
    %c0_i32_1 = arith.constant 0 : i32
    return %c0_i32, %c0_i32_0 : i32, i32
  }
  func.func @transform_2(%arg0: i32) -> (i32, i32, i32, i32, i32) {
    %c0_i32 = arith.constant 0 : i32
    %c0_i32_0 = arith.constant 0 : i32
    %c0_i32_1 = arith.constant 0 : i32
    %c0_i32_2 = arith.constant 0 : i32
    %c0_i32_3 = arith.constant 0 : i32
    return %arg0, %c0_i32, %c0_i32_0, %c0_i32_1, %c0_i32_2 : i32, i32, i32, i32, i32
  }
  func.func @transform_3(%arg0: i32) -> (i32, i32, i32) {
    %c0_i32 = arith.constant 0 : i32
    %c0_i32_0 = arith.constant 0 : i32
    %c0_i32_1 = arith.constant 0 : i32
    return %arg0, %c0_i32, %c0_i32_0 : i32, i32, i32
  }
  func.func @transform_4(%arg0: i32) -> (i32, i32, i32) {
    %c0_i32 = arith.constant 0 : i32
    %c0_i32_0 = arith.constant 0 : i32
    %c0_i32_1 = arith.constant 0 : i32
    return %arg0, %c0_i32, %c0_i32_0 : i32, i32, i32
  }
}

module attributes {stable_mosaic.version = 11 : i64} {
  func.func @_bn_gelu_to_nchw_kernel(%arg0: i32, %arg1: memref<2x256x4xf32, #tpu.memory_space<vmem>>, %arg2: memref<1x1x4xf32, #tpu.memory_space<vmem>>, %arg3: memref<1x1x4xf32, #tpu.memory_space<vmem>>, %arg4: memref<2x4x256xf32, #tpu.memory_space<vmem>>) attributes {dimension_semantics = [#tpu.dimension_semantics<parallel>], iteration_bounds = array<i64: 2>, scalar_prefetch = 0 : i64, scratch_operands = 0 : i64, tpu.core_type = #tpu.core_type<tc>, window_params = [{transform_indices = @transform_0, window_bounds = array<i64: 2, 256, 4>}, {pipeline_mode = #tpu.pipeline_mode<synchronous>, transform_indices = @transform_1, window_bounds = array<i64: 1, 1, 4>}, {pipeline_mode = #tpu.pipeline_mode<synchronous>, transform_indices = @transform_2, window_bounds = array<i64: 1, 1, 4>}, {transform_indices = @transform_3, window_bounds = array<i64: 2, 4, 256>}]} {
    %c0 = arith.constant 0 : index
    %c0_0 = arith.constant 0 : index
    %c0_1 = arith.constant 0 : index
    %0 = vector.load %arg1[%c0, %c0_0, %c0_1] : memref<2x256x4xf32, #tpu.memory_space<vmem>>, vector<2x256x4xf32>
    %c0_2 = arith.constant 0 : index
    %c0_3 = arith.constant 0 : index
    %c0_4 = arith.constant 0 : index
    %1 = vector.load %arg2[%c0_2, %c0_3, %c0_4] : memref<1x1x4xf32, #tpu.memory_space<vmem>>, vector<1x1x4xf32>
    %2 = vector.broadcast %1 : vector<1x1x4xf32> to vector<2x256x4xf32>
    %3 = arith.mulf %0, %2 : vector<2x256x4xf32>
    %c0_5 = arith.constant 0 : index
    %c0_6 = arith.constant 0 : index
    %c0_7 = arith.constant 0 : index
    %4 = vector.load %arg3[%c0_5, %c0_6, %c0_7] : memref<1x1x4xf32, #tpu.memory_space<vmem>>, vector<1x1x4xf32>
    %5 = vector.broadcast %4 : vector<1x1x4xf32> to vector<2x256x4xf32>
    %6 = arith.addf %3, %5 : vector<2x256x4xf32>
    %cst = arith.constant 5.000000e-01 : f32
    %7 = vector.broadcast %cst : f32 to vector<2x256x4xf32>
    %8 = arith.mulf %7, %6 : vector<2x256x4xf32>
    %cst_8 = arith.constant 0.707106769 : f32
    %9 = vector.broadcast %cst_8 : f32 to vector<2x256x4xf32>
    %10 = arith.mulf %6, %9 : vector<2x256x4xf32>
    %11 = math.erf %10 : vector<2x256x4xf32>
    %cst_9 = arith.constant 1.000000e+00 : f32
    %12 = vector.broadcast %cst_9 : f32 to vector<2x256x4xf32>
    %13 = arith.addf %12, %11 : vector<2x256x4xf32>
    %14 = arith.mulf %8, %13 : vector<2x256x4xf32>
    %15 = vector.extract_strided_slice %14 {offsets = [0, 0, 0], sizes = [1, 256, 4], strides = [1, 1, 1]} : vector<2x256x4xf32> to vector<1x256x4xf32>
    %16 = vector.shape_cast %15 : vector<1x256x4xf32> to vector<256x4xf32>
    %17 = tpu.transpose %16, [1, 0] : vector<256x4xf32> -> vector<4x256xf32>
    %c0_10 = arith.constant 0 : index
    %c0_11 = arith.constant 0 : index
    %c0_12 = arith.constant 0 : index
    %18 = vector.load %arg4[%c0_10, %c0_11, %c0_12] : memref<2x4x256xf32, #tpu.memory_space<vmem>>, vector<1x4x256xf32>
    %19 = vector.shape_cast %18 : vector<1x4x256xf32> to vector<4x256xf32>
    %20 = vector.shape_cast %17 : vector<4x256xf32> to vector<1x4x256xf32>
    tpu.vector_store %arg4[%c0_10, %c0_11, %c0_12], %20 {strides = array<i32>} : memref<2x4x256xf32, #tpu.memory_space<vmem>>, vector<1x4x256xf32>,
    %21 = vector.extract_strided_slice %14 {offsets = [1, 0, 0], sizes = [1, 256, 4], strides = [1, 1, 1]} : vector<2x256x4xf32> to vector<1x256x4xf32>
    %22 = vector.shape_cast %21 : vector<1x256x4xf32> to vector<256x4xf32>
    %23 = tpu.transpose %22, [1, 0] : vector<256x4xf32> -> vector<4x256xf32>
    %c1 = arith.constant 1 : index
    %c0_13 = arith.constant 0 : index
    %c0_14 = arith.constant 0 : index
    %24 = vector.load %arg4[%c1, %c0_13, %c0_14] : memref<2x4x256xf32, #tpu.memory_space<vmem>>, vector<1x4x256xf32>
    %25 = vector.shape_cast %24 : vector<1x4x256xf32> to vector<4x256xf32>
    %26 = vector.shape_cast %23 : vector<4x256xf32> to vector<1x4x256xf32>
    tpu.vector_store %arg4[%c1, %c0_13, %c0_14], %26 {strides = array<i32>} : memref<2x4x256xf32, #tpu.memory_space<vmem>>, vector<1x4x256xf32>,
    return
  }
  func.func @transform_0(%arg0: i32) -> (i32, i32, i32) {
    %c0_i32 = arith.constant 0 : i32
    %c0_i32_0 = arith.constant 0 : i32
    %c0_i32_1 = arith.constant 0 : i32
    return %arg0, %c0_i32, %c0_i32_0 : i32, i32, i32
  }
  func.func @transform_1(%arg0: i32) -> (i32, i32, i32) {
    %c0_i32 = arith.constant 0 : i32
    %c0_i32_0 = arith.constant 0 : i32
    %c0_i32_1 = arith.constant 0 : i32
    %c0_i32_2 = arith.constant 0 : i32
    return %c0_i32, %c0_i32_0, %c0_i32_1 : i32, i32, i32
  }
  func.func @transform_2(%arg0: i32) -> (i32, i32, i32) {
    %c0_i32 = arith.constant 0 : i32
    %c0_i32_0 = arith.constant 0 : i32
    %c0_i32_1 = arith.constant 0 : i32
    %c0_i32_2 = arith.constant 0 : i32
    return %c0_i32, %c0_i32_0, %c0_i32_1 : i32, i32, i32
  }
  func.func @transform_3(%arg0: i32) -> (i32, i32, i32) {
    %c0_i32 = arith.constant 0 : i32
    %c0_i32_0 = arith.constant 0 : i32
    %c0_i32_1 = arith.constant 0 : i32
    return %arg0, %c0_i32, %c0_i32_0 : i32, i32, i32
  }
}

</mosaic_0001>

<llo_original>
// kernel: upsample_forward.3
$region0: #{upsample_forward.3}
  #allocation0 [shape = 'u32[]', space=smem, size = 0x4, offset = 0x4, fixed_abs, tag = 'smem constant byte address 0x4 - core index']
  #allocation1 [shape = 'u32[144,128]{1,0:T(1,128)}', space=vmem, size = 0x12000, scoped, tag = 'internal scratch']
  %s0 = inlined_call_operand.vmem [shape: f32[4,256,4], index: 0, kind: input, shape index: {}]
  %s1 = inlined_call_operand.vmem [shape: f32[1,1,4], index: 1, kind: input, shape index: {}]
  %s2 = inlined_call_operand.vmem [shape: f32[1,1,4], index: 2, kind: input, shape index: {}]
  %s3 = inlined_call_operand.vmem [shape: f32[4,4,256], index: 3, kind: output, shape index: {}]
  %s4 = sld [smem:[#allocation0]]
  $region45: #{upsample_forward.3} parent=0
    _
  %s6 = ssub.s32 1, %s4
  %s7 = scalar_select 0, %s6, %s4
  loop: start=0, step=1, limit=4
  $region2: #{upsample_forward.3} parent=0 // loop_pre_header
    _
  $region3: #{upsample_forward.3} parent=0 // loop_header
    %s9 = sphi 0, %s13
    %p10 = scmp.ge.s32.totalorder %s9, 4
    %s19 = sphi 0, %s21
    %s22 = sphi 0, %s19
    %s23 = sphi 0, %s22
    %s39 = sphi 0, %s23
    %s43 = sphi 0, %s43
    %s45 = sphi 0, %s43
    %s46 = sphi 0, %s45
    %s60 = sphi 0, %s46
    %s64 = sphi 0, %s64
    %s66 = sphi 0, %s64
    %s67 = sphi 0, %s66
    %s81 = sphi 0, %s67
    %s87 = sphi 0, %s89
    %s90 = sphi 0, %s87
    %s91 = sphi 0, %s90
    %s107 = sphi 0, %s91
  $region4: #{upsample_forward.3} parent=0 // loop_header_branch
    %12 = sbr.rel (%p10) target = $region8
  $region5: #{upsample_forward.3} parent=0 // loop_body
    %s14 = ssub.s32 %s9, 1
    %s15 = ssub.s32 %s9, 2
    %s16 = sadd.s32 %s9, 1
    %s17 = ssub.s32 %s9, %s16
    %p18 = scmp.eq.s32.totalorder %s17, 0
    %s20 = sadd.s32 %s19, 1
    %s21 = scalar_select %p18, %s19, %s20
    %p24 = pneg %p18
    %p25 = scmp.eq.s32.totalorder %s9, 1
    %p26 = por %p24, %p25
    %p27 = scmp.ne.s32.totalorder %s19, %s22
    %p28 = scmp.eq.s32.totalorder %s9, 0
    %p29 = por %p27, %p28
    %p30 = scmp.ne.s32.totalorder %s19, %s22
    %p31 = scmp.eq.s32.totalorder %s14, 1
    %p32 = por %p30, %p31
    %p33 = scmp.ne.s32.totalorder %s22, %s23
    %p34 = scmp.eq.s32.totalorder %s14, 0
    %p35 = por %p33, %p34
    %p36 = scmp.ne.s32.totalorder %s22, %s23
    %p37 = scmp.eq.s32.totalorder %s15, 1
    %p38 = por %p36, %p37
    %p40 = scmp.ne.s32.totalorder %s23, %s39
    %p41 = scmp.eq.s32.totalorder %s15, 0
    %p42 = por %p40, %p41
    %s44 = sadd.s32 %s43, 1
    %p47 = scmp.eq.s32.totalorder %s9, 1
    %p48 = scmp.ne.s32.totalorder %s43, %s45
    %p49 = scmp.eq.s32.totalorder %s9, 0
    %p50 = por %p48, %p49
    %p51 = scmp.ne.s32.totalorder %s43, %s45
    %p52 = scmp.eq.s32.totalorder %s14, 1
    %p53 = por %p51, %p52
    %p54 = scmp.ne.s32.totalorder %s45, %s46
    %p55 = scmp.eq.s32.totalorder %s14, 0
    %p56 = por %p54, %p55
    %p57 = scmp.ne.s32.totalorder %s45, %s46
    %p58 = scmp.eq.s32.totalorder %s15, 1
    %p59 = por %p57, %p58
    %p61 = scmp.ne.s32.totalorder %s46, %s60
    %p62 = scmp.eq.s32.totalorder %s15, 0
    %p63 = por %p61, %p62
    %s65 = sadd.s32 %s64, 1
    %p68 = scmp.eq.s32.totalorder %s9, 1
    %p69 = scmp.ne.s32.totalorder %s64, %s66
    %p70 = scmp.eq.s32.totalorder %s9, 0
    %p71 = por %p69, %p70
    %p72 = scmp.ne.s32.totalorder %s64, %s66
    %p73 = scmp.eq.s32.totalorder %s14, 1
    %p74 = por %p72, %p73
    %p75 = scmp.ne.s32.totalorder %s66, %s67
    %p76 = scmp.eq.s32.totalorder %s14, 0
    %p77 = por %p75, %p76
    %p78 = scmp.ne.s32.totalorder %s66, %s67
    %p79 = scmp.eq.s32.totalorder %s15, 1
    %p80 = por %p78, %p79
    %p82 = scmp.ne.s32.totalorder %s67, %s81
    %p83 = scmp.eq.s32.totalorder %s15, 0
    %p84 = por %p82, %p83
    %s85 = ssub.s32 %s9, %s16
    %p86 = scmp.eq.s32.totalorder %s85, 0
    %s88 = sadd.s32 %s87, 1
    %s89 = scalar_select %p86, %s87, %s88
    %p92 = pneg %p86
    %p93 = scmp.eq.s32.totalorder %s9, 1
    %p94 = por %p92, %p93
    %p95 = scmp.ne.s32.totalorder %s87, %s90
    %p96 = scmp.eq.s32.totalorder %s9, 0
    %p97 = por %p95, %p96
    %p98 = scmp.ne.s32.totalorder %s87, %s90
    %p99 = scmp.eq.s32.totalorder %s14, 1
    %p100 = por %p98, %p99
    %p101 = scmp.ne.s32.totalorder %s90, %s91
    %p102 = scmp.eq.s32.totalorder %s14, 0
    %p103 = por %p101, %p102
    %p104 = scmp.ne.s32.totalorder %s90, %s91
    %p105 = scmp.eq.s32.totalorder %s15, 1
    %p106 = por %p104, %p105
    %p108 = scmp.ne.s32.totalorder %s91, %s107
    %p109 = scmp.eq.s32.totalorder %s15, 0
    %p110 = por %p108, %p109
    %p111 = scmp.le.s32.totalorder 1, %s9
    %p112 = scmp.lt.s32.totalorder %s9, 3
    %p113 = pnand %p111, %p112
    %p114 = pneg %p113
    // Predicated region
    $region9: #{upsample_forward.3} parent=5 // pred_check
      _
    $region10: #{upsample_forward.3} parent=5 // pred_check_branch
      %116 = sbr.rel (%p113) target = $region12
    $region11: #{upsample_forward.3} parent=5 // pred_region
      %s117 = ssub.s32 %s9, 1
      // Predicated region
      $region13: #{upsample_forward.3} parent=11 // pred_check
        %p118 = pneg %p56
      $region14: #{upsample_forward.3} parent=11 // pred_check_branch
        %120 = sbr.rel (%p118) target = $region16
      $region15: #{upsample_forward.3} parent=11 // pred_region
        _
      $region16: #{upsample_forward.3} parent=11 // pred_fallthru
        _
      // Predicated region
      $region17: #{upsample_forward.3} parent=11 // pred_check
        %p121 = pneg %p77
      $region18: #{upsample_forward.3} parent=11 // pred_check_branch
        %123 = sbr.rel (%p121) target = $region20
      $region19: #{upsample_forward.3} parent=11 // pred_region
        _
      $region20: #{upsample_forward.3} parent=11 // pred_fallthru
        _
    $region12: #{upsample_forward.3} parent=5 // pred_fallthru
      _
    %p124 = scmp.lt.s32.totalorder %s9, 2
    // Predicated region
    $region21: #{upsample_forward.3} parent=5 // pred_check
      %p125 = pneg %p124
    $region22: #{upsample_forward.3} parent=5 // pred_check_branch
      %127 = sbr.rel (%p125) target = $region24
    $region23: #{upsample_forward.3} parent=5 // pred_region
      // Predicated region
      $region25: #{upsample_forward.3} parent=23 // pred_check
        %p128 = pneg %p29
      $region26: #{upsample_forward.3} parent=23 // pred_check_branch
        %130 = sbr.rel (%p128) target = $region28
      $region27: #{upsample_forward.3} parent=23 // pred_region
        %s131 = smul.u32 2, %s9
        %p132 = scmp.lt.s32.totalorder %s131, 3
        %s133 = scalar_select %p132, %s131, 3
        %s134 = smul.addr %s133, 32
        %s135 = smul.addr %s134, 8
        %s136 = scalar_lea.vmem %s0, %s135
        %s137 = smul.u32 2, %s9
      $region28: #{upsample_forward.3} parent=23 // pred_fallthru
        _
    $region24: #{upsample_forward.3} parent=5 // pred_fallthru
      _
    %p138 = scmp.le.s32.totalorder 1, %s9
    %p139 = scmp.lt.s32.totalorder %s9, 3
    %p140 = pnand %p138, %p139
    %p141 = pneg %p140
    // Predicated region
    $region29: #{upsample_forward.3} parent=5 // pred_check
      _
    $region30: #{upsample_forward.3} parent=5 // pred_check_branch
      %143 = sbr.rel (%p140) target = $region32
    $region31: #{upsample_forward.3} parent=5 // pred_region
      %s144 = ssub.s32 %s9, 1
      %s145 = smul.u32 2, %s14
      %p146 = scmp.lt.s32.totalorder %s145, 3
      %s147 = scalar_select %p146, %s145, 3
      %s148 = smul.addr %s147, 32
      %s149 = smul.addr %s148, 8
      %s150 = scalar_lea.vmem %s0, %s149
      %p151 = pneg %p35
      %p152 = pneg %p32
      %p153 = pneg %p56
      %p154 = pneg %p53
      %p155 = pneg %p77
      %p156 = pneg %p74
      %p157 = pneg %p103
      %p158 = pneg %p100
      %s159 = smul.u32 2, %s14
      %p160 = scmp.lt.s32.totalorder %s159, 3
      %s161 = scalar_select %p160, %s159, 3
      %s162 = smul.addr %s161, 2
      %s163 = smul.addr %s162, 4
      %s164 = scalar_lea.vmem %s3, %s163
      %s165 = smul.u32 2, %s14
      %p166 = scmp.lt.s32.totalorder %s165, 3
      %s167 = scalar_select %p166, %s165, 3
      %s168 = smul.addr %s167, 32
      %s169 = smul.addr %s168, 8
      %s170 = scalar_lea.vmem %s0, %s169
      %s171 = smul.u32 2, %s14
      %s172 = smul.u32 2, %s14
      %p173 = scmp.lt.s32.totalorder %s172, 3
      %s174 = scalar_select %p173, %s172, 3
      %s175 = smul.addr %s174, 2
      %s176 = smul.addr %s175, 4
      %s177 = scalar_lea.vmem %s3, %s176
      %s178 = smul.u32 2, %s14
      %v179 = vld [vmem:[%s170] sm:$0xff]
      %v180 = vld [vmem:[%s170 + $0x8] sm:$0xff]
      %v181 = vld [vmem:[%s170 + $0x10] sm:$0xff]
      %v182 = vld [vmem:[%s170 + $0x18] sm:$0xff]
      %v183 = vld [vmem:[%s170 + $0x20] sm:$0xff]
      %v184 = vld [vmem:[%s170 + $0x28] sm:$0xff]
      %v185 = vld [vmem:[%s170 + $0x30] sm:$0xff]
      %v186 = vld [vmem:[%s170 + $0x38] sm:$0xff]
      %v187 = vld [vmem:[%s170 + $0x40] sm:$0xff]
      %v188 = vld [vmem:[%s170 + $0x48] sm:$0xff]
      %v189 = vld [vmem:[%s170 + $0x50] sm:$0xff]
      %v190 = vld [vmem:[%s170 + $0x58] sm:$0xff]
      %v191 = vld [vmem:[%s170 + $0x60] sm:$0xff]
      %v192 = vld [vmem:[%s170 + $0x68] sm:$0xff]
      %v193 = vld [vmem:[%s170 + $0x70] sm:$0xff]
      %v194 = vld [vmem:[%s170 + $0x78] sm:$0xff]
      %v195 = vld [vmem:[%s170 + $0x80] sm:$0xff]
      %v196 = vld [vmem:[%s170 + $0x88] sm:$0xff]
      %v197 = vld [vmem:[%s170 + $0x90] sm:$0xff]
      %v198 = vld [vmem:[%s170 + $0x98] sm:$0xff]
      %v199 = vld [vmem:[%s170 + $0xa0] sm:$0xff]
      %v200 = vld [vmem:[%s170 + $0xa8] sm:$0xff]
      %v201 = vld [vmem:[%s170 + $0xb0] sm:$0xff]
      %v202 = vld [vmem:[%s170 + $0xb8] sm:$0xff]
      %v203 = vld [vmem:[%s170 + $0xc0] sm:$0xff]
      %v204 = vld [vmem:[%s170 + $0xc8] sm:$0xff]
      %v205 = vld [vmem:[%s170 + $0xd0] sm:$0xff]
      %v206 = vld [vmem:[%s170 + $0xd8] sm:$0xff]
      %v207 = vld [vmem:[%s170 + $0xe0] sm:$0xff]
      %v208 = vld [vmem:[%s170 + $0xe8] sm:$0xff]
      %v209 = vld [vmem:[%s170 + $0xf0] sm:$0xff]
      %v210 = vld [vmem:[%s170 + $0xf8] sm:$0xff]
      %v211 = vld [vmem:[%s170 + $0x100] sm:$0xff]
      %v212 = vld [vmem:[%s170 + $0x108] sm:$0xff]
      %v213 = vld [vmem:[%s170 + $0x110] sm:$0xff]
      %v214 = vld [vmem:[%s170 + $0x118] sm:$0xff]
      %v215 = vld [vmem:[%s170 + $0x120] sm:$0xff]
      %v216 = vld [vmem:[%s170 + $0x128] sm:$0xff]
      %v217 = vld [vmem:[%s170 + $0x130] sm:$0xff]
      %v218 = vld [vmem:[%s170 + $0x138] sm:$0xff]
      %v219 = vld [vmem:[%s170 + $0x140] sm:$0xff]
      %v220 = vld [vmem:[%s170 + $0x148] sm:$0xff]
      %v221 = vld [vmem:[%s170 + $0x150] sm:$0xff]
      %v222 = vld [vmem:[%s170 + $0x158] sm:$0xff]
      %v223 = vld [vmem:[%s170 + $0x160] sm:$0xff]
      %v224 = vld [vmem:[%s170 + $0x168] sm:$0xff]
      %v225 = vld [vmem:[%s170 + $0x170] sm:$0xff]
      %v226 = vld [vmem:[%s170 + $0x178] sm:$0xff]
      %v227 = vld [vmem:[%s170 + $0x180] sm:$0xff]
      %v228 = vld [vmem:[%s170 + $0x188] sm:$0xff]
      %v229 = vld [vmem:[%s170 + $0x190] sm:$0xff]
      %v230 = vld [vmem:[%s170 + $0x198] sm:$0xff]
      %v231 = vld [vmem:[%s170 + $0x1a0] sm:$0xff]
      %v232 = vld [vmem:[%s170 + $0x1a8] sm:$0xff]
      %v233 = vld [vmem:[%s170 + $0x1b0] sm:$0xff]
      %v234 = vld [vmem:[%s170 + $0x1b8] sm:$0xff]
      %v235 = vld [vmem:[%s170 + $0x1c0] sm:$0xff]
      %v236 = vld [vmem:[%s170 + $0x1c8] sm:$0xff]
      %v237 = vld [vmem:[%s170 + $0x1d0] sm:$0xff]
      %v238 = vld [vmem:[%s170 + $0x1d8] sm:$0xff]
      %v239 = vld [vmem:[%s170 + $0x1e0] sm:$0xff]
      %v240 = vld [vmem:[%s170 + $0x1e8] sm:$0xff]
      %v241 = vld [vmem:[%s170 + $0x1f0] sm:$0xff]
      %v242 = vld [vmem:[%s170 + $0x1f8] sm:$0xff]
      %v243 = vld [vmem:[%s1] sm:$0x1]
      %v245 = vlaneseq
      %v246 = vshrl.u32 %v245, 7
      %v247 = vsub.s32 0, %v246
      %v248 = vrot.slane %v243, %v247
      %v250 = vmul.f32 %v179, %v248
      %v251 = vmul.f32 %v180, %v248
      %v252 = vmul.f32 %v181, %v248
      %v253 = vmul.f32 %v182, %v248
      %v254 = vmul.f32 %v183, %v248
      %v255 = vmul.f32 %v184, %v248
      %v256 = vmul.f32 %v185, %v248
      %v257 = vmul.f32 %v186, %v248
      %v258 = vmul.f32 %v187, %v248
      %v259 = vmul.f32 %v188, %v248
      %v260 = vmul.f32 %v189, %v248
      %v261 = vmul.f32 %v190, %v248
      %v262 = vmul.f32 %v191, %v248
      %v263 = vmul.f32 %v192, %v248
      %v264 = vmul.f32 %v193, %v248
      %v265 = vmul.f32 %v194, %v248
      %v266 = vmul.f32 %v195, %v248
      %v267 = vmul.f32 %v196, %v248
      %v268 = vmul.f32 %v197, %v248
      %v269 = vmul.f32 %v198, %v248
      %v270 = vmul.f32 %v199, %v248
      %v271 = vmul.f32 %v200, %v248
      %v272 = vmul.f32 %v201, %v248
      %v273 = vmul.f32 %v202, %v248
      %v274 = vmul.f32 %v203, %v248
      %v275 = vmul.f32 %v204, %v248
      %v276 = vmul.f32 %v205, %v248
      %v277 = vmul.f32 %v206, %v248
      %v278 = vmul.f32 %v207, %v248
      %v279 = vmul.f32 %v208, %v248
      %v280 = vmul.f32 %v209, %v248
      %v281 = vmul.f32 %v210, %v248
      %v282 = vmul.f32 %v211, %v248
      %v283 = vmul.f32 %v212, %v248
      %v284 = vmul.f32 %v213, %v248
      %v285 = vmul.f32 %v214, %v248
      %v286 = vmul.f32 %v215, %v248
      %v287 = vmul.f32 %v216, %v248
      %v288 = vmul.f32 %v217, %v248
      %v289 = vmul.f32 %v218, %v248
      %v290 = vmul.f32 %v219, %v248
      %v291 = vmul.f32 %v220, %v248
      %v292 = vmul.f32 %v221, %v248
      %v293 = vmul.f32 %v222, %v248
      %v294 = vmul.f32 %v223, %v248
      %v295 = vmul.f32 %v224, %v248
      %v296 = vmul.f32 %v225, %v248
      %v297 = vmul.f32 %v226, %v248
      %v298 = vmul.f32 %v227, %v248
      %v299 = vmul.f32 %v228, %v248
      %v300 = vmul.f32 %v229, %v248
      %v301 = vmul.f32 %v230, %v248
      %v302 = vmul.f32 %v231, %v248
      %v303 = vmul.f32 %v232, %v248
      %v304 = vmul.f32 %v233, %v248
      %v305 = vmul.f32 %v234, %v248
      %v306 = vmul.f32 %v235, %v248
      %v307 = vmul.f32 %v236, %v248
      %v308 = vmul.f32 %v237, %v248
      %v309 = vmul.f32 %v238, %v248
      %v310 = vmul.f32 %v239, %v248
      %v311 = vmul.f32 %v240, %v248
      %v312 = vmul.f32 %v241, %v248
      %v313 = vmul.f32 %v242, %v248
      %v314 = vld [vmem:[%s2] sm:$0x1]
      %v316 = vlaneseq
      %v317 = vshrl.u32 %v316, 7
      %v318 = vsub.s32 0, %v317
      %v319 = vrot.slane %v314, %v318
      %v321 = vadd.f32 %v250, %v319
      %v322 = vadd.f32 %v251, %v319
      %v323 = vadd.f32 %v252, %v319
      %v324 = vadd.f32 %v253, %v319
      %v325 = vadd.f32 %v254, %v319
      %v326 = vadd.f32 %v255, %v319
      %v327 = vadd.f32 %v256, %v319
      %v328 = vadd.f32 %v257, %v319
      %v329 = vadd.f32 %v258, %v319
      %v330 = vadd.f32 %v259, %v319
      %v331 = vadd.f32 %v260, %v319
      %v332 = vadd.f32 %v261, %v319
      %v333 = vadd.f32 %v262, %v319
      %v334 = vadd.f32 %v263, %v319
      %v335 = vadd.f32 %v264, %v319
      %v336 = vadd.f32 %v265, %v319
      %v337 = vadd.f32 %v266, %v319
      %v338 = vadd.f32 %v267, %v319
      %v339 = vadd.f32 %v268, %v319
      %v340 = vadd.f32 %v269, %v319
      %v341 = vadd.f32 %v270, %v319
      %v342 = vadd.f32 %v271, %v319
      %v343 = vadd.f32 %v272, %v319
      %v344 = vadd.f32 %v273, %v319
      %v345 = vadd.f32 %v274, %v319
      %v346 = vadd.f32 %v275, %v319
      %v347 = vadd.f32 %v276, %v319
      %v348 = vadd.f32 %v277, %v319
      %v349 = vadd.f32 %v278, %v319
      %v350 = vadd.f32 %v279, %v319
      %v351 = vadd.f32 %v280, %v319
      %v352 = vadd.f32 %v281, %v319
      %v353 = vadd.f32 %v282, %v319
      %v354 = vadd.f32 %v283, %v319
      %v355 = vadd.f32 %v284, %v319
      %v356 = vadd.f32 %v285, %v319
      %v357 = vadd.f32 %v286, %v319
      %v358 = vadd.f32 %v287, %v319
      %v359 = vadd.f32 %v288, %v319
      %v360 = vadd.f32 %v289, %v319
      %v361 = vadd.f32 %v290, %v319
      %v362 = vadd.f32 %v291, %v319
      %v363 = vadd.f32 %v292, %v319
      %v364 = vadd.f32 %v293, %v319
      %v365 = vadd.f32 %v294, %v319
      %v366 = vadd.f32 %v295, %v319
      %v367 = vadd.f32 %v296, %v319
      %v368 = vadd.f32 %v297, %v319
      %v369 = vadd.f32 %v298, %v319
      %v370 = vadd.f32 %v299, %v319
      %v371 = vadd.f32 %v300, %v319
      %v372 = vadd.f32 %v301, %v319
      %v373 = vadd.f32 %v302, %v319
      %v374 = vadd.f32 %v303, %v319
      %v375 = vadd.f32 %v304, %v319
      %v376 = vadd.f32 %v305, %v319
      %v377 = vadd.f32 %v306, %v319
      %v378 = vadd.f32 %v307, %v319
      %v379 = vadd.f32 %v308, %v319
      %v380 = vadd.f32 %v309, %v319
      %v381 = vadd.f32 %v310, %v319
      %v382 = vadd.f32 %v311, %v319
      %v383 = vadd.f32 %v312, %v319
      %v384 = vadd.f32 %v313, %v319
      %v385 = vmul.f32 %v321, 0.5
      %v386 = vmul.f32 %v322, 0.5
      %v387 = vmul.f32 %v323, 0.5
      %v388 = vmul.f32 %v324, 0.5
      %v389 = vmul.f32 %v325, 0.5
      %v390 = vmul.f32 %v326, 0.5
      %v391 = vmul.f32 %v327, 0.5
      %v392 = vmul.f32 %v328, 0.5
      %v393 = vmul.f32 %v329, 0.5
      %v394 = vmul.f32 %v330, 0.5
      %v395 = vmul.f32 %v331, 0.5
      %v396 = vmul.f32 %v332, 0.5
      %v397 = vmul.f32 %v333, 0.5
      %v398 = vmul.f32 %v334, 0.5
      %v399 = vmul.f32 %v335, 0.5
      %v400 = vmul.f32 %v336, 0.5
      %v401 = vmul.f32 %v337, 0.5
      %v402 = vmul.f32 %v338, 0.5
      %v403 = vmul.f32 %v339, 0.5
      %v404 = vmul.f32 %v340, 0.5
      %v405 = vmul.f32 %v341, 0.5
      %v406 = vmul.f32 %v342, 0.5
      %v407 = vmul.f32 %v343, 0.5
      %v408 = vmul.f32 %v344, 0.5
      %v409 = vmul.f32 %v345, 0.5
      %v410 = vmul.f32 %v346, 0.5
      %v411 = vmul.f32 %v347, 0.5
      %v412 = vmul.f32 %v348, 0.5
      %v413 = vmul.f32 %v349, 0.5
      %v414 = vmul.f32 %v350, 0.5
      %v415 = vmul.f32 %v351, 0.5
      %v416 = vmul.f32 %v352, 0.5
      %v417 = vmul.f32 %v353, 0.5
      %v418 = vmul.f32 %v354, 0.5
      %v419 = vmul.f32 %v355, 0.5
      %v420 = vmul.f32 %v356, 0.5
      %v421 = vmul.f32 %v357, 0.5
      %v422 = vmul.f32 %v358, 0.5
      %v423 = vmul.f32 %v359, 0.5
      %v424 = vmul.f32 %v360, 0.5
      %v425 = vmul.f32 %v361, 0.5
      %v426 = vmul.f32 %v362, 0.5
      %v427 = vmul.f32 %v363, 0.5
      %v428 = vmul.f32 %v364, 0.5
      %v429 = vmul.f32 %v365, 0.5
      %v430 = vmul.f32 %v366, 0.5
      %v431 = vmul.f32 %v367, 0.5
      %v432 = vmul.f32 %v368, 0.5
      %v433 = vmul.f32 %v369, 0.5
      %v434 = vmul.f32 %v370, 0.5
      %v435 = vmul.f32 %v371, 0.5
      %v436 = vmul.f32 %v372, 0.5
      %v437 = vmul.f32 %v373, 0.5
      %v438 = vmul.f32 %v374, 0.5
      %v439 = vmul.f32 %v375, 0.5
      %v440 = vmul.f32 %v376, 0.5
      %v441 = vmul.f32 %v377, 0.5
      %v442 = vmul.f32 %v378, 0.5
      %v443 = vmul.f32 %v379, 0.5
      %v444 = vmul.f32 %v380, 0.5
      %v445 = vmul.f32 %v381, 0.5
      %v446 = vmul.f32 %v382, 0.5
      %v447 = vmul.f32 %v383, 0.5
      %v448 = vmul.f32 %v384, 0.5
      %v449 = vmul.f32 %v321, 0.70710677
      %v450 = vmul.f32 %v322, 0.70710677
      %v451 = vmul.f32 %v323, 0.70710677
      %v452 = vmul.f32 %v324, 0.70710677
      %v453 = vmul.f32 %v325, 0.70710677
      %v454 = vmul.f32 %v326, 0.70710677
      %v455 = vmul.f32 %v327, 0.70710677
      %v456 = vmul.f32 %v328, 0.70710677
      %v457 = vmul.f32 %v329, 0.70710677
      %v458 = vmul.f32 %v330, 0.70710677
      %v459 = vmul.f32 %v331, 0.70710677
      %v460 = vmul.f32 %v332, 0.70710677
      %v461 = vmul.f32 %v333, 0.70710677
      %v462 = vmul.f32 %v334, 0.70710677
      %v463 = vmul.f32 %v335, 0.70710677
      %v464 = vmul.f32 %v336, 0.70710677
      %v465 = vmul.f32 %v337, 0.70710677
      %v466 = vmul.f32 %v338, 0.70710677
      %v467 = vmul.f32 %v339, 0.70710677
      %v468 = vmul.f32 %v340, 0.70710677
      %v469 = vmul.f32 %v341, 0.70710677
      %v470 = vmul.f32 %v342, 0.70710677
      %v471 = vmul.f32 %v343, 0.70710677
      %v472 = vmul.f32 %v344, 0.70710677
      %v473 = vmul.f32 %v345, 0.70710677
      %v474 = vmul.f32 %v346, 0.70710677
      %v475 = vmul.f32 %v347, 0.70710677
      %v476 = vmul.f32 %v348, 0.70710677
      %v477 = vmul.f32 %v349, 0.70710677
      %v478 = vmul.f32 %v350, 0.70710677
      %v479 = vmul.f32 %v351, 0.70710677
      %v480 = vmul.f32 %v352, 0.70710677
      %v481 = vmul.f32 %v353, 0.70710677
      %v482 = vmul.f32 %v354, 0.70710677
      %v483 = vmul.f32 %v355, 0.70710677
      %v484 = vmul.f32 %v356, 0.70710677
      %v485 = vmul.f32 %v357, 0.70710677
      %v486 = vmul.f32 %v358, 0.70710677
      %v487 = vmul.f32 %v359, 0.70710677
      %v488 = vmul.f32 %v360, 0.70710677
      %v489 = vmul.f32 %v361, 0.70710677
      %v490 = vmul.f32 %v362, 0.70710677
      %v491 = vmul.f32 %v363, 0.70710677
      %v492 = vmul.f32 %v364, 0.70710677
      %v493 = vmul.f32 %v365, 0.70710677
      %v494 = vmul.f32 %v366, 0.70710677
      %v495 = vmul.f32 %v367, 0.70710677
      %v496 = vmul.f32 %v368, 0.70710677
      %v497 = vmul.f32 %v369, 0.70710677
      %v498 = vmul.f32 %v370, 0.70710677
      %v499 = vmul.f32 %v371, 0.70710677
      %v500 = vmul.f32 %v372, 0.70710677
      %v501 = vmul.f32 %v373, 0.70710677
      %v502 = vmul.f32 %v374, 0.70710677
      %v503 = vmul.f32 %v375, 0.70710677
      %v504 = vmul.f32 %v376, 0.70710677
      %v505 = vmul.f32 %v377, 0.70710677
      %v506 = vmul.f32 %v378, 0.70710677
      %v507 = vmul.f32 %v379, 0.70710677
      %v508 = vmul.f32 %v380, 0.70710677
      %v509 = vmul.f32 %v381, 0.70710677
      %v510 = vmul.f32 %v382, 0.70710677
      %v511 = vmul.f32 %v383, 0.70710677
      %v512 = vmul.f32 %v384, 0.70710677
      %v513 = verf.f32.pop %v449
      %v514 = verf.f32.pop %v450
      %v515 = verf.f32.pop %v451
      %v516 = verf.f32.pop %v452
      %v517 = verf.f32.pop %v453
      %v518 = verf.f32.pop %v454
      %v519 = verf.f32.pop %v455
      %v520 = verf.f32.pop %v456
      %v521 = verf.f32.pop %v457
      %v522 = verf.f32.pop %v458
      %v523 = verf.f32.pop %v459
      %v524 = verf.f32.pop %v460
      %v525 = verf.f32.pop %v461
      %v526 = verf.f32.pop %v462
      %v527 = verf.f32.pop %v463
      %v528 = verf.f32.pop %v464
      %v529 = verf.f32.pop %v465
      %v530 = verf.f32.pop %v466
      %v531 = verf.f32.pop %v467
      %v532 = verf.f32.pop %v468
      %v533 = verf.f32.pop %v469
      %v534 = verf.f32.pop %v470
      %v535 = verf.f32.pop %v471
      %v536 = verf.f32.pop %v472
      %v537 = verf.f32.pop %v473
      %v538 = verf.f32.pop %v474
      %v539 = verf.f32.pop %v475
      %v540 = verf.f32.pop %v476
      %v541 = verf.f32.pop %v477
      %v542 = verf.f32.pop %v478
      %v543 = verf.f32.pop %v479
      %v544 = verf.f32.pop %v480
      %v545 = verf.f32.pop %v481
      %v546 = verf.f32.pop %v482
      %v547 = verf.f32.pop %v483
      %v548 = verf.f32.pop %v484
      %v549 = verf.f32.pop %v485
      %v550 = verf.f32.pop %v486
      %v551 = verf.f32.pop %v487
      %v552 = verf.f32.pop %v488
      %v553 = verf.f32.pop %v489
      %v554 = verf.f32.pop %v490
      %v555 = verf.f32.pop %v491
      %v556 = verf.f32.pop %v492
      %v557 = verf.f32.pop %v493
      %v558 = verf.f32.pop %v494
      %v559 = verf.f32.pop %v495
      %v560 = verf.f32.pop %v496
      %v561 = verf.f32.pop %v497
      %v562 = verf.f32.pop %v498
      %v563 = verf.f32.pop %v499
      %v564 = verf.f32.pop %v500
      %v565 = verf.f32.pop %v501
      %v566 = verf.f32.pop %v502
      %v567 = verf.f32.pop %v503
      %v568 = verf.f32.pop %v504
      %v569 = verf.f32.pop %v505
      %v570 = verf.f32.pop %v506
      %v571 = verf.f32.pop %v507
      %v572 = verf.f32.pop %v508
      %v573 = verf.f32.pop %v509
      %v574 = verf.f32.pop %v510
      %v575 = verf.f32.pop %v511
      %v576 = verf.f32.pop %v512
      %v577 = vadd.f32 %v513, 1.0
      %v578 = vadd.f32 %v514, 1.0
      %v579 = vadd.f32 %v515, 1.0
      %v580 = vadd.f32 %v516, 1.0
      %v581 = vadd.f32 %v517, 1.0
      %v582 = vadd.f32 %v518, 1.0
      %v583 = vadd.f32 %v519, 1.0
      %v584 = vadd.f32 %v520, 1.0
      %v585 = vadd.f32 %v521, 1.0
      %v586 = vadd.f32 %v522, 1.0
      %v587 = vadd.f32 %v523, 1.0
      %v588 = vadd.f32 %v524, 1.0
      %v589 = vadd.f32 %v525, 1.0
      %v590 = vadd.f32 %v526, 1.0
      %v591 = vadd.f32 %v527, 1.0
      %v592 = vadd.f32 %v528, 1.0
      %v593 = vadd.f32 %v529, 1.0
      %v594 = vadd.f32 %v530, 1.0
      %v595 = vadd.f32 %v531, 1.0
      %v596 = vadd.f32 %v532, 1.0
      %v597 = vadd.f32 %v533, 1.0
      %v598 = vadd.f32 %v534, 1.0
      %v599 = vadd.f32 %v535, 1.0
      %v600 = vadd.f32 %v536, 1.0
      %v601 = vadd.f32 %v537, 1.0
      %v602 = vadd.f32 %v538, 1.0
      %v603 = vadd.f32 %v539, 1.0
      %v604 = vadd.f32 %v540, 1.0
      %v605 = vadd.f32 %v541, 1.0
      %v606 = vadd.f32 %v542, 1.0
      %v607 = vadd.f32 %v543, 1.0
      %v608 = vadd.f32 %v544, 1.0
      %v609 = vadd.f32 %v545, 1.0
      %v610 = vadd.f32 %v546, 1.0
      %v611 = vadd.f32 %v547, 1.0
      %v612 = vadd.f32 %v548, 1.0
      %v613 = vadd.f32 %v549, 1.0
      %v614 = vadd.f32 %v550, 1.0
      %v615 = vadd.f32 %v551, 1.0
      %v616 = vadd.f32 %v552, 1.0
      %v617 = vadd.f32 %v553, 1.0
      %v618 = vadd.f32 %v554, 1.0
      %v619 = vadd.f32 %v555, 1.0
      %v620 = vadd.f32 %v556, 1.0
      %v621 = vadd.f32 %v557, 1.0
      %v622 = vadd.f32 %v558, 1.0
      %v623 = vadd.f32 %v559, 1.0
      %v624 = vadd.f32 %v560, 1.0
      %v625 = vadd.f32 %v561, 1.0
      %v626 = vadd.f32 %v562, 1.0
      %v627 = vadd.f32 %v563, 1.0
      %v628 = vadd.f32 %v564, 1.0
      %v629 = vadd.f32 %v565, 1.0
      %v630 = vadd.f32 %v566, 1.0
      %v631 = vadd.f32 %v567, 1.0
      %v632 = vadd.f32 %v568, 1.0
      %v633 = vadd.f32 %v569, 1.0
      %v634 = vadd.f32 %v570, 1.0
      %v635 = vadd.f32 %v571, 1.0
      %v636 = vadd.f32 %v572, 1.0
      %v637 = vadd.f32 %v573, 1.0
      %v638 = vadd.f32 %v574, 1.0
      %v639 = vadd.f32 %v575, 1.0
      %v640 = vadd.f32 %v576, 1.0
      %v641 = vmul.f32 %v385, %v577
      %v642 = vmul.f32 %v386, %v578
      %v643 = vmul.f32 %v387, %v579
      %v644 = vmul.f32 %v388, %v580
      %v645 = vmul.f32 %v389, %v581
      %v646 = vmul.f32 %v390, %v582
      %v647 = vmul.f32 %v391, %v583
      %v648 = vmul.f32 %v392, %v584
      %v649 = vmul.f32 %v393, %v585
      %v650 = vmul.f32 %v394, %v586
      %v651 = vmul.f32 %v395, %v587
      %v652 = vmul.f32 %v396, %v588
      %v653 = vmul.f32 %v397, %v589
      %v654 = vmul.f32 %v398, %v590
      %v655 = vmul.f32 %v399, %v591
      %v656 = vmul.f32 %v400, %v592
      %v657 = vmul.f32 %v401, %v593
      %v658 = vmul.f32 %v402, %v594
      %v659 = vmul.f32 %v403, %v595
      %v660 = vmul.f32 %v404, %v596
      %v661 = vmul.f32 %v405, %v597
      %v662 = vmul.f32 %v406, %v598
      %v663 = vmul.f32 %v407, %v599
      %v664 = vmul.f32 %v408, %v600
      %v665 = vmul.f32 %v409, %v601
      %v666 = vmul.f32 %v410, %v602
      %v667 = vmul.f32 %v411, %v603
      %v668 = vmul.f32 %v412, %v604
      %v669 = vmul.f32 %v413, %v605
      %v670 = vmul.f32 %v414, %v606
      %v671 = vmul.f32 %v415, %v607
      %v672 = vmul.f32 %v416, %v608
      %v673 = vmul.f32 %v417, %v609
      %v674 = vmul.f32 %v418, %v610
      %v675 = vmul.f32 %v419, %v611
      %v676 = vmul.f32 %v420, %v612
      %v677 = vmul.f32 %v421, %v613
      %v678 = vmul.f32 %v422, %v614
      %v679 = vmul.f32 %v423, %v615
      %v680 = vmul.f32 %v424, %v616
      %v681 = vmul.f32 %v425, %v617
      %v682 = vmul.f32 %v426, %v618
      %v683 = vmul.f32 %v427, %v619
      %v684 = vmul.f32 %v428, %v620
      %v685 = vmul.f32 %v429, %v621
      %v686 = vmul.f32 %v430, %v622
      %v687 = vmul.f32 %v431, %v623
      %v688 = vmul.f32 %v432, %v624
      %v689 = vmul.f32 %v433, %v625
      %v690 = vmul.f32 %v434, %v626
      %v691 = vmul.f32 %v435, %v627
      %v692 = vmul.f32 %v436, %v628
      %v693 = vmul.f32 %v437, %v629
      %v694 = vmul.f32 %v438, %v630
      %v695 = vmul.f32 %v439, %v631
      %v696 = vmul.f32 %v440, %v632
      %v697 = vmul.f32 %v441, %v633
      %v698 = vmul.f32 %v442, %v634
      %v699 = vmul.f32 %v443, %v635
      %v700 = vmul.f32 %v444, %v636
      %v701 = vmul.f32 %v445, %v637
      %v702 = vmul.f32 %v446, %v638
      %v703 = vmul.f32 %v447, %v639
      %v704 = vmul.f32 %v448, %v640
      %705 = vxpose.xlu0.b32.start [1/16] %v641, 128
      %706 = vxpose.xlu0.b32.cont [2/16] %v642, 128
      %707 = vxpose.xlu0.b32.cont [3/16] %v643, 128
      %708 = vxpose.xlu0.b32.cont [4/16] %v644, 128
      %709 = vxpose.xlu0.b32.cont [5/16] %v645, 128
      %710 = vxpose.xlu0.b32.cont [6/16] %v646, 128
      %711 = vxpose.xlu0.b32.cont [7/16] %v647, 128
      %712 = vxpose.xlu0.b32.cont [8/16] %v648, 128
      %713 = vxpose.xlu0.b32.cont [9/16] %v649, 128
      %714 = vxpose.xlu0.b32.cont [10/16] %v650, 128
      %715 = vxpose.xlu0.b32.cont [11/16] %v651, 128
      %716 = vxpose.xlu0.b32.cont [12/16] %v652, 128
      %717 = vxpose.xlu0.b32.cont [13/16] %v653, 128
      %718 = vxpose.xlu0.b32.cont [14/16] %v654, 128
      %719 = vxpose.xlu0.b32.cont [15/16] %v655, 128
      %720 = vxpose.xlu0.b32.end [16/16] %v656, 128
      %v721 = vpop.trf.xlu0
      %v722 = vpop.trf.xlu0
      %v723 = vpop.trf.xlu0
      %v724 = vpop.trf.xlu0
      %v725 = vpop.trf.xlu0
      %v726 = vpop.trf.xlu0
      %v727 = vpop.trf.xlu0
      %v728 = vpop.trf.xlu0
      %v729 = vpop.trf.xlu0
      %v730 = vpop.trf.xlu0
      %v731 = vpop.trf.xlu0
      %v732 = vpop.trf.xlu0
      %v733 = vpop.trf.xlu0
      %v734 = vpop.trf.xlu0
      %v735 = vpop.trf.xlu0
      %v736 = vpop.trf.xlu0
      %737 = vxpose.xlu0.b32.start [1/16] %v657, 128
      %738 = vxpose.xlu0.b32.cont [2/16] %v658, 128
      %739 = vxpose.xlu0.b32.cont [3/16] %v659, 128
      %740 = vxpose.xlu0.b32.cont [4/16] %v660, 128
      %741 = vxpose.xlu0.b32.cont [5/16] %v661, 128
      %742 = vxpose.xlu0.b32.cont [6/16] %v662, 128
      %743 = vxpose.xlu0.b32.cont [7/16] %v663, 128
      %744 = vxpose.xlu0.b32.cont [8/16] %v664, 128
      %745 = vxpose.xlu0.b32.cont [9/16] %v665, 128
      %746 = vxpose.xlu0.b32.cont [10/16] %v666, 128
      %747 = vxpose.xlu0.b32.cont [11/16] %v667, 128
      %748 = vxpose.xlu0.b32.cont [12/16] %v668, 128
      %749 = vxpose.xlu0.b32.cont [13/16] %v669, 128
      %750 = vxpose.xlu0.b32.cont [14/16] %v670, 128
      %751 = vxpose.xlu0.b32.cont [15/16] %v671, 128
      %752 = vxpose.xlu0.b32.end [16/16] %v672, 128
      %v753 = vpop.trf.xlu0
      %v754 = vpop.trf.xlu0
      %v755 = vpop.trf.xlu0
      %v756 = vpop.trf.xlu0
      %v757 = vpop.trf.xlu0
      %v758 = vpop.trf.xlu0
      %v759 = vpop.trf.xlu0
      %v760 = vpop.trf.xlu0
      %v761 = vpop.trf.xlu0
      %v762 = vpop.trf.xlu0
      %v763 = vpop.trf.xlu0
      %v764 = vpop.trf.xlu0
      %v765 = vpop.trf.xlu0
      %v766 = vpop.trf.xlu0
      %v767 = vpop.trf.xlu0
      %v768 = vpop.trf.xlu0
      %v771 = vcombine.low %v721, %v753
      %773 = vst [vmem:[%s177] sm:$0xff] %v771
      %774 = vxpose.xlu0.b32.start [1/16] %v673, 128
      %775 = vxpose.xlu0.b32.cont [2/16] %v674, 128
      %776 = vxpose.xlu0.b32.cont [3/16] %v675, 128
      %777 = vxpose.xlu0.b32.cont [4/16] %v676, 128
      %778 = vxpose.xlu0.b32.cont [5/16] %v677, 128
      %779 = vxpose.xlu0.b32.cont [6/16] %v678, 128
      %780 = vxpose.xlu0.b32.cont [7/16] %v679, 128
      %781 = vxpose.xlu0.b32.cont [8/16] %v680, 128
      %782 = vxpose.xlu0.b32.cont [9/16] %v681, 128
      %783 = vxpose.xlu0.b32.cont [10/16] %v682, 128
      %784 = vxpose.xlu0.b32.cont [11/16] %v683, 128
      %785 = vxpose.xlu0.b32.cont [12/16] %v684, 128
      %786 = vxpose.xlu0.b32.cont [13/16] %v685, 128
      %787 = vxpose.xlu0.b32.cont [14/16] %v686, 128
      %788 = vxpose.xlu0.b32.cont [15/16] %v687, 128
      %789 = vxpose.xlu0.b32.end [16/16] %v688, 128
      %v790 = vpop.trf.xlu0
      %v791 = vpop.trf.xlu0
      %v792 = vpop.trf.xlu0
      %v793 = vpop.trf.xlu0
      %v794 = vpop.trf.xlu0
      %v795 = vpop.trf.xlu0
      %v796 = vpop.trf.xlu0
      %v797 = vpop.trf.xlu0
      %v798 = vpop.trf.xlu0
      %v799 = vpop.trf.xlu0
      %v800 = vpop.trf.xlu0
      %v801 = vpop.trf.xlu0
      %v802 = vpop.trf.xlu0
      %v803 = vpop.trf.xlu0
      %v804 = vpop.trf.xlu0
      %v805 = vpop.trf.xlu0
      %806 = vxpose.xlu0.b32.start [1/16] %v689, 128
      %807 = vxpose.xlu0.b32.cont [2/16] %v690, 128
      %808 = vxpose.xlu0.b32.cont [3/16] %v691, 128
      %809 = vxpose.xlu0.b32.cont [4/16] %v692, 128
      %810 = vxpose.xlu0.b32.cont [5/16] %v693, 128
      %811 = vxpose.xlu0.b32.cont [6/16] %v694, 128
      %812 = vxpose.xlu0.b32.cont [7/16] %v695, 128
      %813 = vxpose.xlu0.b32.cont [8/16] %v696, 128
      %814 = vxpose.xlu0.b32.cont [9/16] %v697, 128
      %815 = vxpose.xlu0.b32.cont [10/16] %v698, 128
      %816 = vxpose.xlu0.b32.cont [11/16] %v699, 128
      %817 = vxpose.xlu0.b32.cont [12/16] %v700, 128
      %818 = vxpose.xlu0.b32.cont [13/16] %v701, 128
      %819 = vxpose.xlu0.b32.cont [14/16] %v702, 128
      %820 = vxpose.xlu0.b32.cont [15/16] %v703, 128
      %821 = vxpose.xlu0.b32.end [16/16] %v704, 128
      %v822 = vpop.trf.xlu0
      %v823 = vpop.trf.xlu0
      %v824 = vpop.trf.xlu0
      %v825 = vpop.trf.xlu0
      %v826 = vpop.trf.xlu0
      %v827 = vpop.trf.xlu0
      %v828 = vpop.trf.xlu0
      %v829 = vpop.trf.xlu0
      %v830 = vpop.trf.xlu0
      %v831 = vpop.trf.xlu0
      %v832 = vpop.trf.xlu0
      %v833 = vpop.trf.xlu0
      %v834 = vpop.trf.xlu0
      %v835 = vpop.trf.xlu0
      %v836 = vpop.trf.xlu0
      %v837 = vpop.trf.xlu0
      %v840 = vcombine.low %v790, %v822
      %s842 = scalar_lea.vmem %s177, 8
      %843 = vst [vmem:[%s842] sm:$0xff] %v840
      %s844 = smul.u32 2, %s14
      %p845 = scmp.lt.s32.totalorder %s844, 3
      %s846 = scalar_select %p845, %s844, 3
      %s847 = smul.addr %s846, 2
      %s848 = smul.addr %s847, 4
      %s849 = scalar_lea.vmem %s3, %s848
      // Predicated region
      $region33: #{upsample_forward.3} parent=31 // pred_check
        %p850 = pneg %p100
      $region34: #{upsample_forward.3} parent=31 // pred_check_branch
        %852 = sbr.rel (%p850) target = $region36
      $region35: #{upsample_forward.3} parent=31 // pred_region
        %s853 = smul.u32 2, %s14
      $region36: #{upsample_forward.3} parent=31 // pred_fallthru
        _
    $region32: #{upsample_forward.3} parent=5 // pred_fallthru
      _
    %p854 = scmp.le.s32.totalorder 2, %s9
    // Predicated region
    $region37: #{upsample_forward.3} parent=5 // pred_check
      %p855 = pneg %p854
    $region38: #{upsample_forward.3} parent=5 // pred_check_branch
      %857 = sbr.rel (%p855) target = $region40
    $region39: #{upsample_forward.3} parent=5 // pred_region
      %s858 = ssub.s32 %s9, 2
      // Predicated region
      $region41: #{upsample_forward.3} parent=39 // pred_check
        %p859 = pneg %p106
      $region42: #{upsample_forward.3} parent=39 // pred_check_branch
        %861 = sbr.rel (%p859) target = $region44
      $region43: #{upsample_forward.3} parent=39 // pred_region
        %s862 = smul.u32 2, %s15
        %p863 = scmp.lt.s32.totalorder %s862, 3
        %s864 = scalar_select %p863, %s862, 3
        %s865 = smul.addr %s864, 2
        %s866 = smul.addr %s865, 4
        %s867 = scalar_lea.vmem %s3, %s866
      $region44: #{upsample_forward.3} parent=39 // pred_fallthru
        _
    $region40: #{upsample_forward.3} parent=5 // pred_fallthru
      _
  $region6: #{upsample_forward.3} parent=0 // loop_footer
    %s13 = sadd.s32 1, %s9
  $region7: #{upsample_forward.3} parent=0 // loop_footer_branch
    %8 = sbr.rel target = $region3
  $region8: #{upsample_forward.3} parent=0 // loop_exit
    _

// kernel: upsample_forward.2
$region0: #{upsample_forward.2}
  #allocation0 [shape = 'u32[]', space=smem, size = 0x4, offset = 0x4, fixed_abs, tag = 'smem constant byte address 0x4 - core index']
  #allocation1 [shape = 'u32[144,128]{1,0:T(1,128)}', space=vmem, size = 0x12000, scoped, tag = 'internal scratch']
  #allocation2 [shape = 'f32[2,10,10,8]{3,2,1,0:T(8,128)}', space=vmem, size = 0x28000, scoped, tag = 'scratch operand']
  %s0 = inlined_call_operand.vmem [shape: f32[4,8,8,8], index: 0, kind: input, shape index: {}]
  %s1 = inlined_call_operand.vmem [shape: bf16[72,16], index: 1, kind: input, shape index: {}]
  %s2 = inlined_call_operand.vmem [shape: f32[4,8,2,8,8], index: 2, kind: output, shape index: {0}]
  %s3 = inlined_call_operand.vmem [shape: f32[2,1,16], index: 3, kind: output, shape index: {1}]
  %s4 = inlined_call_operand.vmem [shape: f32[2,1,16], index: 4, kind: output, shape index: {2}]
  %5 = xla_tuple %s2, %s3, %s4
  %s6 = sld [smem:[#allocation0]]
  $region57: #{upsample_forward.2} parent=0
    _
  %s8 = ssub.s32 1, %s6
  %s9 = scalar_select 0, %s8, %s6
  loop: start=0, step=1, limit=4
  $region2: #{upsample_forward.2} parent=0 // loop_pre_header
    _
  $region3: #{upsample_forward.2} parent=0 // loop_header
    %s11 = sphi 0, %s15
    %p12 = scmp.ge.s32.totalorder %s11, 4
    %s21 = sphi 0, %s23
    %s24 = sphi 0, %s21
    %s25 = sphi 0, %s24
    %s41 = sphi 0, %s25
    %s45 = sphi 0, %s45
    %s47 = sphi 0, %s45
    %s48 = sphi 0, %s47
    %s62 = sphi 0, %s48
    %s68 = sphi 0, %s70
    %s71 = sphi 0, %s68
    %s72 = sphi 0, %s71
    %s88 = sphi 0, %s72
    %s94 = sphi 0, %s96
    %s97 = sphi 0, %s94
    %s98 = sphi 0, %s97
    %s114 = sphi 0, %s98
    %s120 = sphi 0, %s122
    %s123 = sphi 0, %s120
    %s124 = sphi 0, %s123
    %s140 = sphi 0, %s124
  $region4: #{upsample_forward.2} parent=0 // loop_header_branch
    %14 = sbr.rel (%p12) target = $region8
  $region5: #{upsample_forward.2} parent=0 // loop_body
    %s16 = ssub.s32 %s11, 1
    %s17 = ssub.s32 %s11, 2
    %s18 = sadd.s32 %s11, 1
    %s19 = ssub.s32 %s11, %s18
    %p20 = scmp.eq.s32.totalorder %s19, 0
    %s22 = sadd.s32 %s21, 1
    %s23 = scalar_select %p20, %s21, %s22
    %p26 = pneg %p20
    %p27 = scmp.eq.s32.totalorder %s11, 1
    %p28 = por %p26, %p27
    %p29 = scmp.ne.s32.totalorder %s21, %s24
    %p30 = scmp.eq.s32.totalorder %s11, 0
    %p31 = por %p29, %p30
    %p32 = scmp.ne.s32.totalorder %s21, %s24
    %p33 = scmp.eq.s32.totalorder %s16, 1
    %p34 = por %p32, %p33
    %p35 = scmp.ne.s32.totalorder %s24, %s25
    %p36 = scmp.eq.s32.totalorder %s16, 0
    %p37 = por %p35, %p36
    %p38 = scmp.ne.s32.totalorder %s24, %s25
    %p39 = scmp.eq.s32.totalorder %s17, 1
    %p40 = por %p38, %p39
    %p42 = scmp.ne.s32.totalorder %s25, %s41
    %p43 = scmp.eq.s32.totalorder %s17, 0
    %p44 = por %p42, %p43
    %s46 = sadd.s32 %s45, 1
    %p49 = scmp.eq.s32.totalorder %s11, 1
    %p50 = scmp.ne.s32.totalorder %s45, %s47
    %p51 = scmp.eq.s32.totalorder %s11, 0
    %p52 = por %p50, %p51
    %p53 = scmp.ne.s32.totalorder %s45, %s47
    %p54 = scmp.eq.s32.totalorder %s16, 1
    %p55 = por %p53, %p54
    %p56 = scmp.ne.s32.totalorder %s47, %s48
    %p57 = scmp.eq.s32.totalorder %s16, 0
    %p58 = por %p56, %p57
    %p59 = scmp.ne.s32.totalorder %s47, %s48
    %p60 = scmp.eq.s32.totalorder %s17, 1
    %p61 = por %p59, %p60
    %p63 = scmp.ne.s32.totalorder %s48, %s62
    %p64 = scmp.eq.s32.totalorder %s17, 0
    %p65 = por %p63, %p64
    %s66 = ssub.s32 %s11, %s18
    %p67 = scmp.eq.s32.totalorder %s66, 0
    %s69 = sadd.s32 %s68, 1
    %s70 = scalar_select %p67, %s68, %s69
    %p73 = pneg %p67
    %p74 = scmp.eq.s32.totalorder %s11, 1
    %p75 = por %p73, %p74
    %p76 = scmp.ne.s32.totalorder %s68, %s71
    %p77 = scmp.eq.s32.totalorder %s11, 0
    %p78 = por %p76, %p77
    %p79 = scmp.ne.s32.totalorder %s68, %s71
    %p80 = scmp.eq.s32.totalorder %s16, 1
    %p81 = por %p79, %p80
    %p82 = scmp.ne.s32.totalorder %s71, %s72
    %p83 = scmp.eq.s32.totalorder %s16, 0
    %p84 = por %p82, %p83
    %p85 = scmp.ne.s32.totalorder %s71, %s72
    %p86 = scmp.eq.s32.totalorder %s17, 1
    %p87 = por %p85, %p86
    %p89 = scmp.ne.s32.totalorder %s72, %s88
    %p90 = scmp.eq.s32.totalorder %s17, 0
    %p91 = por %p89, %p90
    %s92 = ssub.s32 %s11, %s18
    %p93 = scmp.eq.s32.totalorder %s92, 0
    %s95 = sadd.s32 %s94, 1
    %s96 = scalar_select %p93, %s94, %s95
    %p99 = pneg %p93
    %p100 = scmp.eq.s32.totalorder %s11, 1
    %p101 = por %p99, %p100
    %p102 = scmp.ne.s32.totalorder %s94, %s97
    %p103 = scmp.eq.s32.totalorder %s11, 0
    %p104 = por %p102, %p103
    %p105 = scmp.ne.s32.totalorder %s94, %s97
    %p106 = scmp.eq.s32.totalorder %s16, 1
    %p107 = por %p105, %p106
    %p108 = scmp.ne.s32.totalorder %s97, %s98
    %p109 = scmp.eq.s32.totalorder %s16, 0
    %p110 = por %p108, %p109
    %p111 = scmp.ne.s32.totalorder %s97, %s98
    %p112 = scmp.eq.s32.totalorder %s17, 1
    %p113 = por %p111, %p112
    %p115 = scmp.ne.s32.totalorder %s98, %s114
    %p116 = scmp.eq.s32.totalorder %s17, 0
    %p117 = por %p115, %p116
    %s118 = ssub.s32 %s11, %s18
    %p119 = scmp.eq.s32.totalorder %s118, 0
    %s121 = sadd.s32 %s120, 1
    %s122 = scalar_select %p119, %s120, %s121
    %p125 = pneg %p119
    %p126 = scmp.eq.s32.totalorder %s11, 1
    %p127 = por %p125, %p126
    %p128 = scmp.ne.s32.totalorder %s120, %s123
    %p129 = scmp.eq.s32.totalorder %s11, 0
    %p130 = por %p128, %p129
    %p131 = scmp.ne.s32.totalorder %s120, %s123
    %p132 = scmp.eq.s32.totalorder %s16, 1
    %p133 = por %p131, %p132
    %p134 = scmp.ne.s32.totalorder %s123, %s124
    %p135 = scmp.eq.s32.totalorder %s16, 0
    %p136 = por %p134, %p135
    %p137 = scmp.ne.s32.totalorder %s123, %s124
    %p138 = scmp.eq.s32.totalorder %s17, 1
    %p139 = por %p137, %p138
    %p141 = scmp.ne.s32.totalorder %s124, %s140
    %p142 = scmp.eq.s32.totalorder %s17, 0
    %p143 = por %p141, %p142
    %p144 = scmp.le.s32.totalorder 1, %s11
    %p145 = scmp.lt.s32.totalorder %s11, 3
    %p146 = pnand %p144, %p145
    %p147 = pneg %p146
    // Predicated region
    $region9: #{upsample_forward.2} parent=5 // pred_check
      _
    $region10: #{upsample_forward.2} parent=5 // pred_check_branch
      %149 = sbr.rel (%p146) target = $region12
    $region11: #{upsample_forward.2} parent=5 // pred_region
      %s150 = ssub.s32 %s11, 1
      // Predicated region
      $region13: #{upsample_forward.2} parent=11 // pred_check
        %p151 = pneg %p58
      $region14: #{upsample_forward.2} parent=11 // pred_check_branch
        %153 = sbr.rel (%p151) target = $region16
      $region15: #{upsample_forward.2} parent=11 // pred_region
        _
      $region16: #{upsample_forward.2} parent=11 // pred_fallthru
        _
    $region12: #{upsample_forward.2} parent=5 // pred_fallthru
      _
    %p154 = scmp.lt.s32.totalorder %s11, 2
    // Predicated region
    $region17: #{upsample_forward.2} parent=5 // pred_check
      %p155 = pneg %p154
    $region18: #{upsample_forward.2} parent=5 // pred_check_branch
      %157 = sbr.rel (%p155) target = $region20
    $region19: #{upsample_forward.2} parent=5 // pred_region
      // Predicated region
      $region21: #{upsample_forward.2} parent=19 // pred_check
        %p158 = pneg %p31
      $region22: #{upsample_forward.2} parent=19 // pred_check_branch
        %160 = sbr.rel (%p158) target = $region24
      $region23: #{upsample_forward.2} parent=19 // pred_region
        %s161 = smul.u32 2, %s11
        %p162 = scmp.lt.s32.totalorder %s161, 3
        %s163 = scalar_select %p162, %s161, 3
        %s164 = smul.addr %s163, 8
        %s165 = smul.addr %s164, 8
        %s166 = scalar_lea.vmem %s0, %s165
        %s167 = smul.u32 2, %s11
      $region24: #{upsample_forward.2} parent=19 // pred_fallthru
        _
    $region20: #{upsample_forward.2} parent=5 // pred_fallthru
      _
    %p168 = scmp.le.s32.totalorder 1, %s11
    %p169 = scmp.lt.s32.totalorder %s11, 3
    %p170 = pnand %p168, %p169
    %p171 = pneg %p170
    // Predicated region
    $region25: #{upsample_forward.2} parent=5 // pred_check
      _
    $region26: #{upsample_forward.2} parent=5 // pred_check_branch
      %173 = sbr.rel (%p170) target = $region28
    $region27: #{upsample_forward.2} parent=5 // pred_region
      %s174 = ssub.s32 %s11, 1
      %s175 = smul.u32 2, %s16
      %p176 = scmp.lt.s32.totalorder %s175, 3
      %s177 = scalar_select %p176, %s175, 3
      %s178 = smul.addr %s177, 8
      %s179 = smul.addr %s178, 8
      %s180 = scalar_lea.vmem %s0, %s179
      %p181 = pneg %p37
      %p182 = pneg %p34
      %p183 = pneg %p58
      %p184 = pneg %p55
      %p185 = pneg %p84
      %p186 = pneg %p81
      %s187 = smul.u32 2, %s16
      %p188 = scmp.lt.s32.totalorder %s187, 3
      %s189 = scalar_select %p188, %s187, 3
      %s190 = smul.addr %s189, 16
      %s191 = smul.addr %s190, 8
      %s192 = scalar_lea.vmem %s2, %s191
      %p193 = pneg %p110
      %p194 = pneg %p107
      %p195 = scmp.lt.s32.totalorder %s16, 1
      %s196 = scalar_select %p195, %s16, 1
      %s197 = scalar_lea.vmem %s3, %s196
      %p198 = pneg %p136
      %p199 = pneg %p133
      %p200 = scmp.lt.s32.totalorder %s16, 1
      %s201 = scalar_select %p200, %s16, 1
      %s202 = scalar_lea.vmem %s4, %s201
      %s203 = smul.u32 2, %s16
      %p204 = scmp.lt.s32.totalorder %s203, 3
      %s205 = scalar_select %p204, %s203, 3
      %s206 = smul.addr %s205, 8
      %s207 = smul.addr %s206, 8
      %s208 = scalar_lea.vmem %s0, %s207
      %s209 = smul.u32 2, %s16
      %s210 = smul.u32 2, %s16
      %p211 = scmp.lt.s32.totalorder %s210, 3
      %s212 = scalar_select %p211, %s210, 3
      %s213 = smul.addr %s212, 16
      %s214 = smul.addr %s213, 8
      %s215 = scalar_lea.vmem %s2, %s214
      %s216 = smul.u32 2, %s16
      %p217 = scmp.lt.s32.totalorder %s16, 1
      %s218 = scalar_select %p217, %s16, 1
      %s219 = scalar_lea.vmem %s3, %s218
      %p220 = scmp.lt.s32.totalorder %s16, 1
      %s221 = scalar_select %p220, %s16, 1
      %s222 = scalar_lea.vmem %s4, %s221
      %vm224 = vcmask 64512
      %225 = vst.msk [vmem:[#allocation2] sm:$0xff] %vm224, 0.0
      %vm226 = vcmask 58368
      %227 = vst.msk [vmem:[#allocation2 + $0x8] sm:$0x3] %vm226, 0.0
      %228 = vst.msk [vmem:[#allocation2 + $0x10] sm:$0xff] %vm224, 0.0
      %229 = vst.msk [vmem:[#allocation2 + $0x18] sm:$0x3] %vm226, 0.0
      %230 = vst.msk [vmem:[#allocation2 + $0x20] sm:$0xff] %vm224, 0.0
      %231 = vst.msk [vmem:[#allocation2 + $0x28] sm:$0x3] %vm226, 0.0
      %232 = vst.msk [vmem:[#allocation2 + $0x30] sm:$0xff] %vm224, 0.0
      %233 = vst.msk [vmem:[#allocation2 + $0x38] sm:$0x3] %vm226, 0.0
      %234 = vst.msk [vmem:[#allocation2 + $0x40] sm:$0xff] %vm224, 0.0
      %235 = vst.msk [vmem:[#allocation2 + $0x48] sm:$0x3] %vm226, 0.0
      %236 = vst.msk [vmem:[#allocation2 + $0x50] sm:$0xff] %vm224, 0.0
      %237 = vst.msk [vmem:[#allocation2 + $0x58] sm:$0x3] %vm226, 0.0
      %238 = vst.msk [vmem:[#allocation2 + $0x60] sm:$0xff] %vm224, 0.0
      %239 = vst.msk [vmem:[#allocation2 + $0x68] sm:$0x3] %vm226, 0.0
      %240 = vst.msk [vmem:[#allocation2 + $0x70] sm:$0xff] %vm224, 0.0
      %241 = vst.msk [vmem:[#allocation2 + $0x78] sm:$0x3] %vm226, 0.0
      %242 = vst.msk [vmem:[#allocation2 + $0x80] sm:$0xff] %vm224, 0.0
      %243 = vst.msk [vmem:[#allocation2 + $0x88] sm:$0x3] %vm226, 0.0
      %244 = vst.msk [vmem:[#allocation2 + $0x90] sm:$0xff] %vm224, 0.0
      %245 = vst.msk [vmem:[#allocation2 + $0x98] sm:$0x3] %vm226, 0.0
      %246 = vst.msk [vmem:[#allocation2 + $0xa0] sm:$0xff] %vm224, 0.0
      %247 = vst.msk [vmem:[#allocation2 + $0xa8] sm:$0x3] %vm226, 0.0
      %248 = vst.msk [vmem:[#allocation2 + $0xb0] sm:$0xff] %vm224, 0.0
      %249 = vst.msk [vmem:[#allocation2 + $0xb8] sm:$0x3] %vm226, 0.0
      %250 = vst.msk [vmem:[#allocation2 + $0xc0] sm:$0xff] %vm224, 0.0
      %251 = vst.msk [vmem:[#allocation2 + $0xc8] sm:$0x3] %vm226, 0.0
      %252 = vst.msk [vmem:[#allocation2 + $0xd0] sm:$0xff] %vm224, 0.0
      %253 = vst.msk [vmem:[#allocation2 + $0xd8] sm:$0x3] %vm226, 0.0
      %254 = vst.msk [vmem:[#allocation2 + $0xe0] sm:$0xff] %vm224, 0.0
      %255 = vst.msk [vmem:[#allocation2 + $0xe8] sm:$0x3] %vm226, 0.0
      %256 = vst.msk [vmem:[#allocation2 + $0xf0] sm:$0xff] %vm224, 0.0
      %257 = vst.msk [vmem:[#allocation2 + $0xf8] sm:$0x3] %vm226, 0.0
      %258 = vst.msk [vmem:[#allocation2 + $0x100] sm:$0xff] %vm224, 0.0
      %259 = vst.msk [vmem:[#allocation2 + $0x108] sm:$0x3] %vm226, 0.0
      %260 = vst.msk [vmem:[#allocation2 + $0x110] sm:$0xff] %vm224, 0.0
      %261 = vst.msk [vmem:[#allocation2 + $0x118] sm:$0x3] %vm226, 0.0
      %262 = vst.msk [vmem:[#allocation2 + $0x120] sm:$0xff] %vm224, 0.0
      %263 = vst.msk [vmem:[#allocation2 + $0x128] sm:$0x3] %vm226, 0.0
      %264 = vst.msk [vmem:[#allocation2 + $0x130] sm:$0xff] %vm224, 0.0
      %265 = vst.msk [vmem:[#allocation2 + $0x138] sm:$0x3] %vm226, 0.0
      %v266 = vld [vmem:[%s208] sm:$0xff]
      %v267 = vld [vmem:[%s208 + $0x8] sm:$0xff]
      %v268 = vld [vmem:[%s208 + $0x10] sm:$0xff]
      %v269 = vld [vmem:[%s208 + $0x18] sm:$0xff]
      %v270 = vld [vmem:[%s208 + $0x20] sm:$0xff]
      %v271 = vld [vmem:[%s208 + $0x28] sm:$0xff]
      %v272 = vld [vmem:[%s208 + $0x30] sm:$0xff]
      %v273 = vld [vmem:[%s208 + $0x38] sm:$0xff]
      %v274 = vld [vmem:[%s208 + $0x40] sm:$0xff]
      %v275 = vld [vmem:[%s208 + $0x48] sm:$0xff]
      %v276 = vld [vmem:[%s208 + $0x50] sm:$0xff]
      %v277 = vld [vmem:[%s208 + $0x58] sm:$0xff]
      %v278 = vld [vmem:[%s208 + $0x60] sm:$0xff]
      %v279 = vld [vmem:[%s208 + $0x68] sm:$0xff]
      %v280 = vld [vmem:[%s208 + $0x70] sm:$0xff]
      %v281 = vld [vmem:[%s208 + $0x78] sm:$0xff]
      %s282 = scalar_lea.vmem [#allocation2], 16
      %283 = vst.msk [vmem:[%s282 + $0x1] sm:$0xff] %vm224, %v266
      %284 = vst.msk [vmem:[%s282 + $0x11] sm:$0xff] %vm224, %v267
      %285 = vst.msk [vmem:[%s282 + $0x21] sm:$0xff] %vm224, %v268
      %286 = vst.msk [vmem:[%s282 + $0x31] sm:$0xff] %vm224, %v269
      %287 = vst.msk [vmem:[%s282 + $0x41] sm:$0xff] %vm224, %v270
      %288 = vst.msk [vmem:[%s282 + $0x51] sm:$0xff] %vm224, %v271
      %289 = vst.msk [vmem:[%s282 + $0x61] sm:$0xff] %vm224, %v272
      %290 = vst.msk [vmem:[%s282 + $0x71] sm:$0xff] %vm224, %v273
      %291 = vst.msk [vmem:[%s282 + $0xa1] sm:$0xff] %vm224, %v274
      %292 = vst.msk [vmem:[%s282 + $0xb1] sm:$0xff] %vm224, %v275
      %293 = vst.msk [vmem:[%s282 + $0xc1] sm:$0xff] %vm224, %v276
      %294 = vst.msk [vmem:[%s282 + $0xd1] sm:$0xff] %vm224, %v277
      %295 = vst.msk [vmem:[%s282 + $0xe1] sm:$0xff] %vm224, %v278
      %296 = vst.msk [vmem:[%s282 + $0xf1] sm:$0xff] %vm224, %v279
      %297 = vst.msk [vmem:[%s282 + $0x101] sm:$0xff] %vm224, %v280
      %298 = vst.msk [vmem:[%s282 + $0x111] sm:$0xff] %vm224, %v281
      %v299 = vld [vmem:[#allocation2] sm:$0xff]
      %v300 = vld [vmem:[#allocation2 + $0x10] sm:$0xff]
      %v301 = vld [vmem:[#allocation2 + $0x20] sm:$0xff]
      %v302 = vld [vmem:[#allocation2 + $0x30] sm:$0xff]
      %v303 = vld [vmem:[#allocation2 + $0x40] sm:$0xff]
      %v304 = vld [vmem:[#allocation2 + $0x50] sm:$0xff]
      %v305 = vld [vmem:[#allocation2 + $0x60] sm:$0xff]
      %v306 = vld [vmem:[#allocation2 + $0x70] sm:$0xff]
      %v307 = vld [vmem:[#allocation2 + $0xa0] sm:$0xff]
      %v308 = vld [vmem:[#allocation2 + $0xb0] sm:$0xff]
      %v309 = vld [vmem:[#allocation2 + $0xc0] sm:$0xff]
      %v310 = vld [vmem:[#allocation2 + $0xd0] sm:$0xff]
      %v311 = vld [vmem:[#allocation2 + $0xe0] sm:$0xff]
      %v312 = vld [vmem:[#allocation2 + $0xf0] sm:$0xff]
      %v313 = vld [vmem:[#allocation2 + $0x100] sm:$0xff]
      %v314 = vld [vmem:[#allocation2 + $0x110] sm:$0xff]
      %v315 = vpack.c.bf16 %v299, %v299
      %v316 = vpack.c.bf16 %v300, %v300
      %v317 = vpack.c.bf16 %v301, %v301
      %v318 = vpack.c.bf16 %v302, %v302
      %v319 = vpack.c.bf16 %v303, %v303
      %v320 = vpack.c.bf16 %v304, %v304
      %v321 = vpack.c.bf16 %v305, %v305
      %v322 = vpack.c.bf16 %v306, %v306
      %v323 = vpack.c.bf16 %v307, %v307
      %v324 = vpack.c.bf16 %v308, %v308
      %v325 = vpack.c.bf16 %v309, %v309
      %v326 = vpack.c.bf16 %v310, %v310
      %v327 = vpack.c.bf16 %v311, %v311
      %v328 = vpack.c.bf16 %v312, %v312
      %v329 = vpack.c.bf16 %v313, %v313
      %v330 = vpack.c.bf16 %v314, %v314
      %v331 = vld [vmem:[#allocation2 + $0x1] sm:$0xff]
      %v332 = vld [vmem:[#allocation2 + $0x11] sm:$0xff]
      %v333 = vld [vmem:[#allocation2 + $0x21] sm:$0xff]
      %v334 = vld [vmem:[#allocation2 + $0x31] sm:$0xff]
      %v335 = vld [vmem:[#allocation2 + $0x41] sm:$0xff]
      %v336 = vld [vmem:[#allocation2 + $0x51] sm:$0xff]
      %v337 = vld [vmem:[#allocation2 + $0x61] sm:$0xff]
      %v338 = vld [vmem:[#allocation2 + $0x71] sm:$0xff]
      %v339 = vld [vmem:[#allocation2 + $0xa1] sm:$0xff]
      %v340 = vld [vmem:[#allocation2 + $0xb1] sm:$0xff]
      %v341 = vld [vmem:[#allocation2 + $0xc1] sm:$0xff]
      %v342 = vld [vmem:[#allocation2 + $0xd1] sm:$0xff]
      %v343 = vld [vmem:[#allocation2 + $0xe1] sm:$0xff]
      %v344 = vld [vmem:[#allocation2 + $0xf1] sm:$0xff]
      %v345 = vld [vmem:[#allocation2 + $0x101] sm:$0xff]
      %v346 = vld [vmem:[#allocation2 + $0x111] sm:$0xff]
      %v347 = vpack.c.bf16 %v331, %v331
      %v348 = vpack.c.bf16 %v332, %v332
      %v349 = vpack.c.bf16 %v333, %v333
      %v350 = vpack.c.bf16 %v334, %v334
      %v351 = vpack.c.bf16 %v335, %v335
      %v352 = vpack.c.bf16 %v336, %v336
      %v353 = vpack.c.bf16 %v337, %v337
      %v354 = vpack.c.bf16 %v338, %v338
      %v355 = vpack.c.bf16 %v339, %v339
      %v356 = vpack.c.bf16 %v340, %v340
      %v357 = vpack.c.bf16 %v341, %v341
      %v358 = vpack.c.bf16 %v342, %v342
      %v359 = vpack.c.bf16 %v343, %v343
      %v360 = vpack.c.bf16 %v344, %v344
      %v361 = vpack.c.bf16 %v345, %v345
      %v362 = vpack.c.bf16 %v346, %v346
      %v363 = vld [vmem:[#allocation2 + $0x2] sm:$0xff]
      %v364 = vld [vmem:[#allocation2 + $0x12] sm:$0xff]
      %v365 = vld [vmem:[#allocation2 + $0x22] sm:$0xff]
      %v366 = vld [vmem:[#allocation2 + $0x32] sm:$0xff]
      %v367 = vld [vmem:[#allocation2 + $0x42] sm:$0xff]
      %v368 = vld [vmem:[#allocation2 + $0x52] sm:$0xff]
      %v369 = vld [vmem:[#allocation2 + $0x62] sm:$0xff]
      %v370 = vld [vmem:[#allocation2 + $0x72] sm:$0xff]
      %v371 = vld [vmem:[#allocation2 + $0xa2] sm:$0xff]
      %v372 = vld [vmem:[#allocation2 + $0xb2] sm:$0xff]
      %v373 = vld [vmem:[#allocation2 + $0xc2] sm:$0xff]
      %v374 = vld [vmem:[#allocation2 + $0xd2] sm:$0xff]
      %v375 = vld [vmem:[#allocation2 + $0xe2] sm:$0xff]
      %v376 = vld [vmem:[#allocation2 + $0xf2] sm:$0xff]
      %v377 = vld [vmem:[#allocation2 + $0x102] sm:$0xff]
      %v378 = vld [vmem:[#allocation2 + $0x112] sm:$0xff]
      %v379 = vpack.c.bf16 %v363, %v363
      %v380 = vpack.c.bf16 %v364, %v364
      %v381 = vpack.c.bf16 %v365, %v365
      %v382 = vpack.c.bf16 %v366, %v366
      %v383 = vpack.c.bf16 %v367, %v367
      %v384 = vpack.c.bf16 %v368, %v368
      %v385 = vpack.c.bf16 %v369, %v369
      %v386 = vpack.c.bf16 %v370, %v370
      %v387 = vpack.c.bf16 %v371, %v371
      %v388 = vpack.c.bf16 %v372, %v372
      %v389 = vpack.c.bf16 %v373, %v373
      %v390 = vpack.c.bf16 %v374, %v374
      %v391 = vpack.c.bf16 %v375, %v375
      %v392 = vpack.c.bf16 %v376, %v376
      %v393 = vpack.c.bf16 %v377, %v377
      %v394 = vpack.c.bf16 %v378, %v378
      %v395 = vld [vmem:[%s282] sm:$0xff]
      %v396 = vld [vmem:[%s282 + $0x10] sm:$0xff]
      %v397 = vld [vmem:[%s282 + $0x20] sm:$0xff]
      %v398 = vld [vmem:[%s282 + $0x30] sm:$0xff]
      %v399 = vld [vmem:[%s282 + $0x40] sm:$0xff]
      %v400 = vld [vmem:[%s282 + $0x50] sm:$0xff]
      %v401 = vld [vmem:[%s282 + $0x60] sm:$0xff]
      %v402 = vld [vmem:[%s282 + $0x70] sm:$0xff]
      %v403 = vld [vmem:[%s282 + $0xa0] sm:$0xff]
      %v404 = vld [vmem:[%s282 + $0xb0] sm:$0xff]
      %v405 = vld [vmem:[%s282 + $0xc0] sm:$0xff]
      %v406 = vld [vmem:[%s282 + $0xd0] sm:$0xff]
      %v407 = vld [vmem:[%s282 + $0xe0] sm:$0xff]
      %v408 = vld [vmem:[%s282 + $0xf0] sm:$0xff]
      %v409 = vld [vmem:[%s282 + $0x100] sm:$0xff]
      %v410 = vld [vmem:[%s282 + $0x110] sm:$0xff]
      %v411 = vpack.c.bf16 %v395, %v395
      %v412 = vpack.c.bf16 %v396, %v396
      %v413 = vpack.c.bf16 %v397, %v397
      %v414 = vpack.c.bf16 %v398, %v398
      %v415 = vpack.c.bf16 %v399, %v399
      %v416 = vpack.c.bf16 %v400, %v400
      %v417 = vpack.c.bf16 %v401, %v401
      %v418 = vpack.c.bf16 %v402, %v402
      %v419 = vpack.c.bf16 %v403, %v403
      %v420 = vpack.c.bf16 %v404, %v404
      %v421 = vpack.c.bf16 %v405, %v405
      %v422 = vpack.c.bf16 %v406, %v406
      %v423 = vpack.c.bf16 %v407, %v407
      %v424 = vpack.c.bf16 %v408, %v408
      %v425 = vpack.c.bf16 %v409, %v409
      %v426 = vpack.c.bf16 %v410, %v410
      %v427 = vld [vmem:[%s282 + $0x1] sm:$0xff]
      %v428 = vld [vmem:[%s282 + $0x11] sm:$0xff]
      %v429 = vld [vmem:[%s282 + $0x21] sm:$0xff]
      %v430 = vld [vmem:[%s282 + $0x31] sm:$0xff]
      %v431 = vld [vmem:[%s282 + $0x41] sm:$0xff]
      %v432 = vld [vmem:[%s282 + $0x51] sm:$0xff]
      %v433 = vld [vmem:[%s282 + $0x61] sm:$0xff]
      %v434 = vld [vmem:[%s282 + $0x71] sm:$0xff]
      %v435 = vld [vmem:[%s282 + $0xa1] sm:$0xff]
      %v436 = vld [vmem:[%s282 + $0xb1] sm:$0xff]
      %v437 = vld [vmem:[%s282 + $0xc1] sm:$0xff]
      %v438 = vld [vmem:[%s282 + $0xd1] sm:$0xff]
      %v439 = vld [vmem:[%s282 + $0xe1] sm:$0xff]
      %v440 = vld [vmem:[%s282 + $0xf1] sm:$0xff]
      %v441 = vld [vmem:[%s282 + $0x101] sm:$0xff]
      %v442 = vld [vmem:[%s282 + $0x111] sm:$0xff]
      %v443 = vpack.c.bf16 %v427, %v427
      %v444 = vpack.c.bf16 %v428, %v428
      %v445 = vpack.c.bf16 %v429, %v429
      %v446 = vpack.c.bf16 %v430, %v430
      %v447 = vpack.c.bf16 %v431, %v431
      %v448 = vpack.c.bf16 %v432, %v432
      %v449 = vpack.c.bf16 %v433, %v433
      %v450 = vpack.c.bf16 %v434, %v434
      %v451 = vpack.c.bf16 %v435, %v435
      %v452 = vpack.c.bf16 %v436, %v436
      %v453 = vpack.c.bf16 %v437, %v437
      %v454 = vpack.c.bf16 %v438, %v438
      %v455 = vpack.c.bf16 %v439, %v439
      %v456 = vpack.c.bf16 %v440, %v440
      %v457 = vpack.c.bf16 %v441, %v441
      %v458 = vpack.c.bf16 %v442, %v442
      %v459 = vld [vmem:[%s282 + $0x2] sm:$0xff]
      %v460 = vld [vmem:[%s282 + $0x12] sm:$0xff]
      %v461 = vld [vmem:[%s282 + $0x22] sm:$0xff]
      %v462 = vld [vmem:[%s282 + $0x32] sm:$0xff]
      %v463 = vld [vmem:[%s282 + $0x42] sm:$0xff]
      %v464 = vld [vmem:[%s282 + $0x52] sm:$0xff]
      %v465 = vld [vmem:[%s282 + $0x62] sm:$0xff]
      %v466 = vld [vmem:[%s282 + $0x72] sm:$0xff]
      %v467 = vld [vmem:[%s282 + $0xa2] sm:$0xff]
      %v468 = vld [vmem:[%s282 + $0xb2] sm:$0xff]
      %v469 = vld [vmem:[%s282 + $0xc2] sm:$0xff]
      %v470 = vld [vmem:[%s282 + $0xd2] sm:$0xff]
      %v471 = vld [vmem:[%s282 + $0xe2] sm:$0xff]
      %v472 = vld [vmem:[%s282 + $0xf2] sm:$0xff]
      %v473 = vld [vmem:[%s282 + $0x102] sm:$0xff]
      %v474 = vld [vmem:[%s282 + $0x112] sm:$0xff]
      %v475 = vpack.c.bf16 %v459, %v459
      %v476 = vpack.c.bf16 %v460, %v460
      %v477 = vpack.c.bf16 %v461, %v461
      %v478 = vpack.c.bf16 %v462, %v462
      %v479 = vpack.c.bf16 %v463, %v463
      %v480 = vpack.c.bf16 %v464, %v464
      %v481 = vpack.c.bf16 %v465, %v465
      %v482 = vpack.c.bf16 %v466, %v466
      %v483 = vpack.c.bf16 %v467, %v467
      %v484 = vpack.c.bf16 %v468, %v468
      %v485 = vpack.c.bf16 %v469, %v469
      %v486 = vpack.c.bf16 %v470, %v470
      %v487 = vpack.c.bf16 %v471, %v471
      %v488 = vpack.c.bf16 %v472, %v472
      %v489 = vpack.c.bf16 %v473, %v473
      %v490 = vpack.c.bf16 %v474, %v474
      %s491 = scalar_lea.vmem [#allocation2], 32
      %v492 = vld [vmem:[%s491] sm:$0xff]
      %v493 = vld [vmem:[%s491 + $0x10] sm:$0xff]
      %v494 = vld [vmem:[%s491 + $0x20] sm:$0xff]
      %v495 = vld [vmem:[%s491 + $0x30] sm:$0xff]
      %v496 = vld [vmem:[%s491 + $0x40] sm:$0xff]
      %v497 = vld [vmem:[%s491 + $0x50] sm:$0xff]
      %v498 = vld [vmem:[%s491 + $0x60] sm:$0xff]
      %v499 = vld [vmem:[%s491 + $0x70] sm:$0xff]
      %v500 = vld [vmem:[%s491 + $0xa0] sm:$0xff]
      %v501 = vld [vmem:[%s491 + $0xb0] sm:$0xff]
      %v502 = vld [vmem:[%s491 + $0xc0] sm:$0xff]
      %v503 = vld [vmem:[%s491 + $0xd0] sm:$0xff]
      %v504 = vld [vmem:[%s491 + $0xe0] sm:$0xff]
      %v505 = vld [vmem:[%s491 + $0xf0] sm:$0xff]
      %v506 = vld [vmem:[%s491 + $0x100] sm:$0xff]
      %v507 = vld [vmem:[%s491 + $0x110] sm:$0xff]
      %v508 = vpack.c.bf16 %v492, %v492
      %v509 = vpack.c.bf16 %v493, %v493
      %v510 = vpack.c.bf16 %v494, %v494
      %v511 = vpack.c.bf16 %v495, %v495
      %v512 = vpack.c.bf16 %v496, %v496
      %v513 = vpack.c.bf16 %v497, %v497
      %v514 = vpack.c.bf16 %v498, %v498
      %v515 = vpack.c.bf16 %v499, %v499
      %v516 = vpack.c.bf16 %v500, %v500
      %v517 = vpack.c.bf16 %v501, %v501
      %v518 = vpack.c.bf16 %v502, %v502
      %v519 = vpack.c.bf16 %v503, %v503
      %v520 = vpack.c.bf16 %v504, %v504
      %v521 = vpack.c.bf16 %v505, %v505
      %v522 = vpack.c.bf16 %v506, %v506
      %v523 = vpack.c.bf16 %v507, %v507
      %v524 = vld [vmem:[%s491 + $0x1] sm:$0xff]
      %v525 = vld [vmem:[%s491 + $0x11] sm:$0xff]
      %v526 = vld [vmem:[%s491 + $0x21] sm:$0xff]
      %v527 = vld [vmem:[%s491 + $0x31] sm:$0xff]
      %v528 = vld [vmem:[%s491 + $0x41] sm:$0xff]
      %v529 = vld [vmem:[%s491 + $0x51] sm:$0xff]
      %v530 = vld [vmem:[%s491 + $0x61] sm:$0xff]
      %v531 = vld [vmem:[%s491 + $0x71] sm:$0xff]
      %v532 = vld [vmem:[%s491 + $0xa1] sm:$0xff]
      %v533 = vld [vmem:[%s491 + $0xb1] sm:$0xff]
      %v534 = vld [vmem:[%s491 + $0xc1] sm:$0xff]
      %v535 = vld [vmem:[%s491 + $0xd1] sm:$0xff]
      %v536 = vld [vmem:[%s491 + $0xe1] sm:$0xff]
      %v537 = vld [vmem:[%s491 + $0xf1] sm:$0xff]
      %v538 = vld [vmem:[%s491 + $0x101] sm:$0xff]
      %v539 = vld [vmem:[%s491 + $0x111] sm:$0xff]
      %v540 = vpack.c.bf16 %v524, %v524
      %v541 = vpack.c.bf16 %v525, %v525
      %v542 = vpack.c.bf16 %v526, %v526
      %v543 = vpack.c.bf16 %v527, %v527
      %v544 = vpack.c.bf16 %v528, %v528
      %v545 = vpack.c.bf16 %v529, %v529
      %v546 = vpack.c.bf16 %v530, %v530
      %v547 = vpack.c.bf16 %v531, %v531
      %v548 = vpack.c.bf16 %v532, %v532
      %v549 = vpack.c.bf16 %v533, %v533
      %v550 = vpack.c.bf16 %v534, %v534
      %v551 = vpack.c.bf16 %v535, %v535
      %v552 = vpack.c.bf16 %v536, %v536
      %v553 = vpack.c.bf16 %v537, %v537
      %v554 = vpack.c.bf16 %v538, %v538
      %v555 = vpack.c.bf16 %v539, %v539
      %v556 = vld [vmem:[%s491 + $0x2] sm:$0xff]
      %v557 = vld [vmem:[%s491 + $0x12] sm:$0xff]
      %v558 = vld [vmem:[%s491 + $0x22] sm:$0xff]
      %v559 = vld [vmem:[%s491 + $0x32] sm:$0xff]
      %v560 = vld [vmem:[%s491 + $0x42] sm:$0xff]
      %v561 = vld [vmem:[%s491 + $0x52] sm:$0xff]
      %v562 = vld [vmem:[%s491 + $0x62] sm:$0xff]
      %v563 = vld [vmem:[%s491 + $0x72] sm:$0xff]
      %v564 = vld [vmem:[%s491 + $0xa2] sm:$0xff]
      %v565 = vld [vmem:[%s491 + $0xb2] sm:$0xff]
      %v566 = vld [vmem:[%s491 + $0xc2] sm:$0xff]
      %v567 = vld [vmem:[%s491 + $0xd2] sm:$0xff]
      %v568 = vld [vmem:[%s491 + $0xe2] sm:$0xff]
      %v569 = vld [vmem:[%s491 + $0xf2] sm:$0xff]
      %v570 = vld [vmem:[%s491 + $0x102] sm:$0xff]
      %v571 = vld [vmem:[%s491 + $0x112] sm:$0xff]
      %v572 = vpack.c.bf16 %v556, %v556
      %v573 = vpack.c.bf16 %v557, %v557
      %v574 = vpack.c.bf16 %v558, %v558
      %v575 = vpack.c.bf16 %v559, %v559
      %v576 = vpack.c.bf16 %v560, %v560
      %v577 = vpack.c.bf16 %v561, %v561
      %v578 = vpack.c.bf16 %v562, %v562
      %v579 = vpack.c.bf16 %v563, %v563
      %v580 = vpack.c.bf16 %v564, %v564
      %v581 = vpack.c.bf16 %v565, %v565
      %v582 = vpack.c.bf16 %v566, %v566
      %v583 = vpack.c.bf16 %v567, %v567
      %v584 = vpack.c.bf16 %v568, %v568
      %v585 = vpack.c.bf16 %v569, %v569
      %v586 = vpack.c.bf16 %v570, %v570
      %v587 = vpack.c.bf16 %v571, %v571
      %604 = vrot.lane.b32.xlu0 %v347, 8
      %v605 = vpop.permute.xlu0 %604
      %606 = vrot.lane.b32.xlu0 %v348, 8
      %v607 = vpop.permute.xlu0 %606
      %608 = vrot.lane.b32.xlu0 %v349, 8
      %v609 = vpop.permute.xlu0 %608
      %610 = vrot.lane.b32.xlu0 %v350, 8
      %v611 = vpop.permute.xlu0 %610
      %612 = vrot.lane.b32.xlu0 %v351, 8
      %v613 = vpop.permute.xlu0 %612
      %614 = vrot.lane.b32.xlu0 %v352, 8
      %v615 = vpop.permute.xlu0 %614
      %616 = vrot.lane.b32.xlu0 %v353, 8
      %v617 = vpop.permute.xlu0 %616
      %618 = vrot.lane.b32.xlu0 %v354, 8
      %v619 = vpop.permute.xlu0 %618
      %620 = vrot.lane.b32.xlu0 %v355, 8
      %v621 = vpop.permute.xlu0 %620
      %622 = vrot.lane.b32.xlu0 %v356, 8
      %v623 = vpop.permute.xlu0 %622
      %624 = vrot.lane.b32.xlu0 %v357, 8
      %v625 = vpop.permute.xlu0 %624
      %626 = vrot.lane.b32.xlu0 %v358, 8
      %v627 = vpop.permute.xlu0 %626
      %628 = vrot.lane.b32.xlu0 %v359, 8
      %v629 = vpop.permute.xlu0 %628
      %630 = vrot.lane.b32.xlu0 %v360, 8
      %v631 = vpop.permute.xlu0 %630
      %632 = vrot.lane.b32.xlu0 %v361, 8
      %v633 = vpop.permute.xlu0 %632
      %634 = vrot.lane.b32.xlu0 %v362, 8
      %v635 = vpop.permute.xlu0 %634
      %652 = vrot.lane.b32.xlu0 %v379, 16
      %v653 = vpop.permute.xlu0 %652
      %654 = vrot.lane.b32.xlu0 %v380, 16
      %v655 = vpop.permute.xlu0 %654
      %656 = vrot.lane.b32.xlu0 %v381, 16
      %v657 = vpop.permute.xlu0 %656
      %658 = vrot.lane.b32.xlu0 %v382, 16
      %v659 = vpop.permute.xlu0 %658
      %660 = vrot.lane.b32.xlu0 %v383, 16
      %v661 = vpop.permute.xlu0 %660
      %662 = vrot.lane.b32.xlu0 %v384, 16
      %v663 = vpop.permute.xlu0 %662
      %664 = vrot.lane.b32.xlu0 %v385, 16
      %v665 = vpop.permute.xlu0 %664
      %666 = vrot.lane.b32.xlu0 %v386, 16
      %v667 = vpop.permute.xlu0 %666
      %668 = vrot.lane.b32.xlu0 %v387, 16
      %v669 = vpop.permute.xlu0 %668
      %670 = vrot.lane.b32.xlu0 %v388, 16
      %v671 = vpop.permute.xlu0 %670
      %672 = vrot.lane.b32.xlu0 %v389, 16
      %v673 = vpop.permute.xlu0 %672
      %674 = vrot.lane.b32.xlu0 %v390, 16
      %v675 = vpop.permute.xlu0 %674
      %676 = vrot.lane.b32.xlu0 %v391, 16
      %v677 = vpop.permute.xlu0 %676
      %678 = vrot.lane.b32.xlu0 %v392, 16
      %v679 = vpop.permute.xlu0 %678
      %680 = vrot.lane.b32.xlu0 %v393, 16
      %v681 = vpop.permute.xlu0 %680
      %682 = vrot.lane.b32.xlu0 %v394, 16
      %v683 = vpop.permute.xlu0 %682
      %700 = vrot.lane.b32.xlu0 %v411, 24
      %v701 = vpop.permute.xlu0 %700
      %702 = vrot.lane.b32.xlu0 %v412, 24
      %v703 = vpop.permute.xlu0 %702
      %704 = vrot.lane.b32.xlu0 %v413, 24
      %v705 = vpop.permute.xlu0 %704
      %706 = vrot.lane.b32.xlu0 %v414, 24
      %v707 = vpop.permute.xlu0 %706
      %708 = vrot.lane.b32.xlu0 %v415, 24
      %v709 = vpop.permute.xlu0 %708
      %710 = vrot.lane.b32.xlu0 %v416, 24
      %v711 = vpop.permute.xlu0 %710
      %712 = vrot.lane.b32.xlu0 %v417, 24
      %v713 = vpop.permute.xlu0 %712
      %714 = vrot.lane.b32.xlu0 %v418, 24
      %v715 = vpop.permute.xlu0 %714
      %716 = vrot.lane.b32.xlu0 %v419, 24
      %v717 = vpop.permute.xlu0 %716
      %718 = vrot.lane.b32.xlu0 %v420, 24
      %v719 = vpop.permute.xlu0 %718
      %720 = vrot.lane.b32.xlu0 %v421, 24
      %v721 = vpop.permute.xlu0 %720
      %722 = vrot.lane.b32.xlu0 %v422, 24
      %v723 = vpop.permute.xlu0 %722
      %724 = vrot.lane.b32.xlu0 %v423, 24
      %v725 = vpop.permute.xlu0 %724
      %726 = vrot.lane.b32.xlu0 %v424, 24
      %v727 = vpop.permute.xlu0 %726
      %728 = vrot.lane.b32.xlu0 %v425, 24
      %v729 = vpop.permute.xlu0 %728
      %730 = vrot.lane.b32.xlu0 %v426, 24
      %v731 = vpop.permute.xlu0 %730
      %748 = vrot.lane.b32.xlu0 %v443, 32
      %v749 = vpop.permute.xlu0 %748
      %750 = vrot.lane.b32.xlu0 %v444, 32
      %v751 = vpop.permute.xlu0 %750
      %752 = vrot.lane.b32.xlu0 %v445, 32
      %v753 = vpop.permute.xlu0 %752
      %754 = vrot.lane.b32.xlu0 %v446, 32
      %v755 = vpop.permute.xlu0 %754
      %756 = vrot.lane.b32.xlu0 %v447, 32
      %v757 = vpop.permute.xlu0 %756
      %758 = vrot.lane.b32.xlu0 %v448, 32
      %v759 = vpop.permute.xlu0 %758
      %760 = vrot.lane.b32.xlu0 %v449, 32
      %v761 = vpop.permute.xlu0 %760
      %762 = vrot.lane.b32.xlu0 %v450, 32
      %v763 = vpop.permute.xlu0 %762
      %764 = vrot.lane.b32.xlu0 %v451, 32
      %v765 = vpop.permute.xlu0 %764
      %766 = vrot.lane.b32.xlu0 %v452, 32
      %v767 = vpop.permute.xlu0 %766
      %768 = vrot.lane.b32.xlu0 %v453, 32
      %v769 = vpop.permute.xlu0 %768
      %770 = vrot.lane.b32.xlu0 %v454, 32
      %v771 = vpop.permute.xlu0 %770
      %772 = vrot.lane.b32.xlu0 %v455, 32
      %v773 = vpop.permute.xlu0 %772
      %774 = vrot.lane.b32.xlu0 %v456, 32
      %v775 = vpop.permute.xlu0 %774
      %776 = vrot.lane.b32.xlu0 %v457, 32
      %v777 = vpop.permute.xlu0 %776
      %778 = vrot.lane.b32.xlu0 %v458, 32
      %v779 = vpop.permute.xlu0 %778
      %796 = vrot.lane.b32.xlu0 %v475, 40
      %v797 = vpop.permute.xlu0 %796
      %798 = vrot.lane.b32.xlu0 %v476, 40
      %v799 = vpop.permute.xlu0 %798
      %800 = vrot.lane.b32.xlu0 %v477, 40
      %v801 = vpop.permute.xlu0 %800
      %802 = vrot.lane.b32.xlu0 %v478, 40
      %v803 = vpop.permute.xlu0 %802
      %804 = vrot.lane.b32.xlu0 %v479, 40
      %v805 = vpop.permute.xlu0 %804
      %806 = vrot.lane.b32.xlu0 %v480, 40
      %v807 = vpop.permute.xlu0 %806
      %808 = vrot.lane.b32.xlu0 %v481, 40
      %v809 = vpop.permute.xlu0 %808
      %810 = vrot.lane.b32.xlu0 %v482, 40
      %v811 = vpop.permute.xlu0 %810
      %812 = vrot.lane.b32.xlu0 %v483, 40
      %v813 = vpop.permute.xlu0 %812
      %814 = vrot.lane.b32.xlu0 %v484, 40
      %v815 = vpop.permute.xlu0 %814
      %816 = vrot.lane.b32.xlu0 %v485, 40
      %v817 = vpop.permute.xlu0 %816
      %818 = vrot.lane.b32.xlu0 %v486, 40
      %v819 = vpop.permute.xlu0 %818
      %820 = vrot.lane.b32.xlu0 %v487, 40
      %v821 = vpop.permute.xlu0 %820
      %822 = vrot.lane.b32.xlu0 %v488, 40
      %v823 = vpop.permute.xlu0 %822
      %824 = vrot.lane.b32.xlu0 %v489, 40
      %v825 = vpop.permute.xlu0 %824
      %826 = vrot.lane.b32.xlu0 %v490, 40
      %v827 = vpop.permute.xlu0 %826
      %844 = vrot.lane.b32.xlu0 %v508, 48
      %v845 = vpop.permute.xlu0 %844
      %846 = vrot.lane.b32.xlu0 %v509, 48
      %v847 = vpop.permute.xlu0 %846
      %848 = vrot.lane.b32.xlu0 %v510, 48
      %v849 = vpop.permute.xlu0 %848
      %850 = vrot.lane.b32.xlu0 %v511, 48
      %v851 = vpop.permute.xlu0 %850
      %852 = vrot.lane.b32.xlu0 %v512, 48
      %v853 = vpop.permute.xlu0 %852
      %854 = vrot.lane.b32.xlu0 %v513, 48
      %v855 = vpop.permute.xlu0 %854
      %856 = vrot.lane.b32.xlu0 %v514, 48
      %v857 = vpop.permute.xlu0 %856
      %858 = vrot.lane.b32.xlu0 %v515, 48
      %v859 = vpop.permute.xlu0 %858
      %860 = vrot.lane.b32.xlu0 %v516, 48
      %v861 = vpop.permute.xlu0 %860
      %862 = vrot.lane.b32.xlu0 %v517, 48
      %v863 = vpop.permute.xlu0 %862
      %864 = vrot.lane.b32.xlu0 %v518, 48
      %v865 = vpop.permute.xlu0 %864
      %866 = vrot.lane.b32.xlu0 %v519, 48
      %v867 = vpop.permute.xlu0 %866
      %868 = vrot.lane.b32.xlu0 %v520, 48
      %v869 = vpop.permute.xlu0 %868
      %870 = vrot.lane.b32.xlu0 %v521, 48
      %v871 = vpop.permute.xlu0 %870
      %872 = vrot.lane.b32.xlu0 %v522, 48
      %v873 = vpop.permute.xlu0 %872
      %874 = vrot.lane.b32.xlu0 %v523, 48
      %v875 = vpop.permute.xlu0 %874
      %892 = vrot.lane.b32.xlu0 %v540, 56
      %v893 = vpop.permute.xlu0 %892
      %894 = vrot.lane.b32.xlu0 %v541, 56
      %v895 = vpop.permute.xlu0 %894
      %896 = vrot.lane.b32.xlu0 %v542, 56
      %v897 = vpop.permute.xlu0 %896
      %898 = vrot.lane.b32.xlu0 %v543, 56
      %v899 = vpop.permute.xlu0 %898
      %900 = vrot.lane.b32.xlu0 %v544, 56
      %v901 = vpop.permute.xlu0 %900
      %902 = vrot.lane.b32.xlu0 %v545, 56
      %v903 = vpop.permute.xlu0 %902
      %904 = vrot.lane.b32.xlu0 %v546, 56
      %v905 = vpop.permute.xlu0 %904
      %906 = vrot.lane.b32.xlu0 %v547, 56
      %v907 = vpop.permute.xlu0 %906
      %908 = vrot.lane.b32.xlu0 %v548, 56
      %v909 = vpop.permute.xlu0 %908
      %910 = vrot.lane.b32.xlu0 %v549, 56
      %v911 = vpop.permute.xlu0 %910
      %912 = vrot.lane.b32.xlu0 %v550, 56
      %v913 = vpop.permute.xlu0 %912
      %914 = vrot.lane.b32.xlu0 %v551, 56
      %v915 = vpop.permute.xlu0 %914
      %916 = vrot.lane.b32.xlu0 %v552, 56
      %v917 = vpop.permute.xlu0 %916
      %918 = vrot.lane.b32.xlu0 %v553, 56
      %v919 = vpop.permute.xlu0 %918
      %920 = vrot.lane.b32.xlu0 %v554, 56
      %v921 = vpop.permute.xlu0 %920
      %922 = vrot.lane.b32.xlu0 %v555, 56
      %v923 = vpop.permute.xlu0 %922
      %940 = vrot.lane.b32.xlu0 %v572, 64
      %v941 = vpop.permute.xlu0 %940
      %942 = vrot.lane.b32.xlu0 %v573, 64
      %v943 = vpop.permute.xlu0 %942
      %944 = vrot.lane.b32.xlu0 %v574, 64
      %v945 = vpop.permute.xlu0 %944
      %946 = vrot.lane.b32.xlu0 %v575, 64
      %v947 = vpop.permute.xlu0 %946
      %948 = vrot.lane.b32.xlu0 %v576, 64
      %v949 = vpop.permute.xlu0 %948
      %950 = vrot.lane.b32.xlu0 %v577, 64
      %v951 = vpop.permute.xlu0 %950
      %952 = vrot.lane.b32.xlu0 %v578, 64
      %v953 = vpop.permute.xlu0 %952
      %954 = vrot.lane.b32.xlu0 %v579, 64
      %v955 = vpop.permute.xlu0 %954
      %956 = vrot.lane.b32.xlu0 %v580, 64
      %v957 = vpop.permute.xlu0 %956
      %958 = vrot.lane.b32.xlu0 %v581, 64
      %v959 = vpop.permute.xlu0 %958
      %960 = vrot.lane.b32.xlu0 %v582, 64
      %v961 = vpop.permute.xlu0 %960
      %962 = vrot.lane.b32.xlu0 %v583, 64
      %v963 = vpop.permute.xlu0 %962
      %964 = vrot.lane.b32.xlu0 %v584, 64
      %v965 = vpop.permute.xlu0 %964
      %966 = vrot.lane.b32.xlu0 %v585, 64
      %v967 = vpop.permute.xlu0 %966
      %968 = vrot.lane.b32.xlu0 %v586, 64
      %v969 = vpop.permute.xlu0 %968
      %970 = vrot.lane.b32.xlu0 %v587, 64
      %v971 = vpop.permute.xlu0 %970
      %v974 = vsel %vm224, %v315, %v605
      %v977 = vsel %vm224, %v316, %v607
      %v980 = vsel %vm224, %v317, %v609
      %v983 = vsel %vm224, %v318, %v611
      %v986 = vsel %vm224, %v319, %v613
      %v989 = vsel %vm224, %v320, %v615
      %v992 = vsel %vm224, %v321, %v617
      %v995 = vsel %vm224, %v322, %v619
      %v998 = vsel %vm224, %v323, %v621
      %v1001 = vsel %vm224, %v324, %v623
      %v1004 = vsel %vm224, %v325, %v625
      %v1007 = vsel %vm224, %v326, %v627
      %v1010 = vsel %vm224, %v327, %v629
      %v1013 = vsel %vm224, %v328, %v631
      %v1016 = vsel %vm224, %v329, %v633
      %v1019 = vsel %vm224, %v330, %v635
      %vm1020 = vcmask 130048
      %v1022 = vsel %vm1020, %v974, %v653
      %v1024 = vsel %vm1020, %v977, %v655
      %v1026 = vsel %vm1020, %v980, %v657
      %v1028 = vsel %vm1020, %v983, %v659
      %v1030 = vsel %vm1020, %v986, %v661
      %v1032 = vsel %vm1020, %v989, %v663
      %v1034 = vsel %vm1020, %v992, %v665
      %v1036 = vsel %vm1020, %v995, %v667
      %v1038 = vsel %vm1020, %v998, %v669
      %v1040 = vsel %vm1020, %v1001, %v671
      %v1042 = vsel %vm1020, %v1004, %v673
      %v1044 = vsel %vm1020, %v1007, %v675
      %v1046 = vsel %vm1020, %v1010, %v677
      %v1048 = vsel %vm1020, %v1013, %v679
      %v1050 = vsel %vm1020, %v1016, %v681
      %v1052 = vsel %vm1020, %v1019, %v683
      %vm1053 = vcmask 195584
      %v1055 = vsel %vm1053, %v1022, %v701
      %v1057 = vsel %vm1053, %v1024, %v703
      %v1059 = vsel %vm1053, %v1026, %v705
      %v1061 = vsel %vm1053, %v1028, %v707
      %v1063 = vsel %vm1053, %v1030, %v709
      %v1065 = vsel %vm1053, %v1032, %v711
      %v1067 = vsel %vm1053, %v1034, %v713
      %v1069 = vsel %vm1053, %v1036, %v715
      %v1071 = vsel %vm1053, %v1038, %v717
      %v1073 = vsel %vm1053, %v1040, %v719
      %v1075 = vsel %vm1053, %v1042, %v721
      %v1077 = vsel %vm1053, %v1044, %v723
      %v1079 = vsel %vm1053, %v1046, %v725
      %v1081 = vsel %vm1053, %v1048, %v727
      %v1083 = vsel %vm1053, %v1050, %v729
      %v1085 = vsel %vm1053, %v1052, %v731
      %vm1086 = vcmask 261120
      %v1088 = vsel %vm1086, %v1055, %v749
      %v1090 = vsel %vm1086, %v1057, %v751
      %v1092 = vsel %vm1086, %v1059, %v753
      %v1094 = vsel %vm1086, %v1061, %v755
      %v1096 = vsel %vm1086, %v1063, %v757
      %v1098 = vsel %vm1086, %v1065, %v759
      %v1100 = vsel %vm1086, %v1067, %v761
      %v1102 = vsel %vm1086, %v1069, %v763
      %v1104 = vsel %vm1086, %v1071, %v765
      %v1106 = vsel %vm1086, %v1073, %v767
      %v1108 = vsel %vm1086, %v1075, %v769
      %v1110 = vsel %vm1086, %v1077, %v771
      %v1112 = vsel %vm1086, %v1079, %v773
      %v1114 = vsel %vm1086, %v1081, %v775
      %v1116 = vsel %vm1086, %v1083, %v777
      %v1118 = vsel %vm1086, %v1085, %v779
      %vm1119 = vcmask 326656
      %v1121 = vsel %vm1119, %v1088, %v797
      %v1123 = vsel %vm1119, %v1090, %v799
      %v1125 = vsel %vm1119, %v1092, %v801
      %v1127 = vsel %vm1119, %v1094, %v803
      %v1129 = vsel %vm1119, %v1096, %v805
      %v1131 = vsel %vm1119, %v1098, %v807
      %v1133 = vsel %vm1119, %v1100, %v809
      %v1135 = vsel %vm1119, %v1102, %v811
      %v1137 = vsel %vm1119, %v1104, %v813
      %v1139 = vsel %vm1119, %v1106, %v815
      %v1141 = vsel %vm1119, %v1108, %v817
      %v1143 = vsel %vm1119, %v1110, %v819
      %v1145 = vsel %vm1119, %v1112, %v821
      %v1147 = vsel %vm1119, %v1114, %v823
      %v1149 = vsel %vm1119, %v1116, %v825
      %v1151 = vsel %vm1119, %v1118, %v827
      %vm1152 = vcmask 392192
      %v1154 = vsel %vm1152, %v1121, %v845
      %v1156 = vsel %vm1152, %v1123, %v847
      %v1158 = vsel %vm1152, %v1125, %v849
      %v1160 = vsel %vm1152, %v1127, %v851
      %v1162 = vsel %vm1152, %v1129, %v853
      %v1164 = vsel %vm1152, %v1131, %v855
      %v1166 = vsel %vm1152, %v1133, %v857
      %v1168 = vsel %vm1152, %v1135, %v859
      %v1170 = vsel %vm1152, %v1137, %v861
      %v1172 = vsel %vm1152, %v1139, %v863
      %v1174 = vsel %vm1152, %v1141, %v865
      %v1176 = vsel %vm1152, %v1143, %v867
      %v1178 = vsel %vm1152, %v1145, %v869
      %v1180 = vsel %vm1152, %v1147, %v871
      %v1182 = vsel %vm1152, %v1149, %v873
      %v1184 = vsel %vm1152, %v1151, %v875
      %vm1185 = vcmask 457728
      %v1187 = vsel %vm1185, %v1154, %v893
      %v1189 = vsel %vm1185, %v1156, %v895
      %v1191 = vsel %vm1185, %v1158, %v897
      %v1193 = vsel %vm1185, %v1160, %v899
      %v1195 = vsel %vm1185, %v1162, %v901
      %v1197 = vsel %vm1185, %v1164, %v903
      %v1199 = vsel %vm1185, %v1166, %v905
      %v1201 = vsel %vm1185, %v1168, %v907
      %v1203 = vsel %vm1185, %v1170, %v909
      %v1205 = vsel %vm1185, %v1172, %v911
      %v1207 = vsel %vm1185, %v1174, %v913
      %v1209 = vsel %vm1185, %v1176, %v915
      %v1211 = vsel %vm1185, %v1178, %v917
      %v1213 = vsel %vm1185, %v1180, %v919
      %v1215 = vsel %vm1185, %v1182, %v921
      %v1217 = vsel %vm1185, %v1184, %v923
      %vm1218 = vcmask 523264
      %v1220 = vsel %vm1218, %v1187, %v941
      %v1222 = vsel %vm1218, %v1189, %v943
      %v1224 = vsel %vm1218, %v1191, %v945
      %v1226 = vsel %vm1218, %v1193, %v947
      %v1228 = vsel %vm1218, %v1195, %v949
      %v1230 = vsel %vm1218, %v1197, %v951
      %v1232 = vsel %vm1218, %v1199, %v953
      %v1234 = vsel %vm1218, %v1201, %v955
      %v1236 = vsel %vm1218, %v1203, %v957
      %v1238 = vsel %vm1218, %v1205, %v959
      %v1240 = vsel %vm1218, %v1207, %v961
      %v1242 = vsel %vm1218, %v1209, %v963
      %v1244 = vsel %vm1218, %v1211, %v965
      %v1246 = vsel %vm1218, %v1213, %v967
      %v1248 = vsel %vm1218, %v1215, %v969
      %v1250 = vsel %vm1218, %v1217, %v971
      %v1251 = vld [vmem:[%s1] sm:$0xf]
      %v1252 = vld [vmem:[%s1 + $0x4] sm:$0xf]
      %v1253 = vld [vmem:[%s1 + $0x8] sm:$0xf]
      %v1254 = vld [vmem:[%s1 + $0xc] sm:$0xf]
      %v1255 = vld [vmem:[%s1 + $0x10] sm:$0xf]
      %v1256 = vld [vmem:[%s1 + $0x14] sm:$0xf]
      %v1257 = vld [vmem:[%s1 + $0x18] sm:$0xf]
      %v1258 = vld [vmem:[%s1 + $0x1c] sm:$0xf]
      %v1259 = vld [vmem:[%s1 + $0x20] sm:$0xf]
      %v1276 = vunpack.c.l.b16 %v1220
      %v1277 = vunpack.c.l.b16 %v1222
      %v1278 = vunpack.c.l.b16 %v1224
      %v1279 = vunpack.c.l.b16 %v1226
      %v1280 = vunpack.c.l.b16 %v1228
      %v1281 = vunpack.c.l.b16 %v1230
      %v1282 = vunpack.c.l.b16 %v1232
      %v1283 = vunpack.c.l.b16 %v1234
      %v1284 = vunpack.c.l.b16 %v1236
      %v1285 = vunpack.c.l.b16 %v1238
      %v1286 = vunpack.c.l.b16 %v1240
      %v1287 = vunpack.c.l.b16 %v1242
      %v1288 = vunpack.c.l.b16 %v1244
      %v1289 = vunpack.c.l.b16 %v1246
      %v1290 = vunpack.c.l.b16 %v1248
      %v1291 = vunpack.c.l.b16 %v1250
      %v1292 = vpack.c.b16 %v1277, %v1276
      %v1293 = vpack.c.b16 %v1279, %v1278
      %v1294 = vpack.c.b16 %v1281, %v1280
      %v1295 = vpack.c.b16 %v1283, %v1282
      %v1296 = vpack.c.b16 %v1285, %v1284
      %v1297 = vpack.c.b16 %v1287, %v1286
      %v1298 = vpack.c.b16 %v1289, %v1288
      %v1299 = vpack.c.b16 %v1291, %v1290
      %v1309 = vunpack.c.l.b16 %v1251
      %v1310 = vunpack.c.l.b16 %v1252
      %v1311 = vunpack.c.l.b16 %v1253
      %v1312 = vunpack.c.l.b16 %v1254
      %v1313 = vunpack.c.l.b16 %v1255
      %v1314 = vunpack.c.l.b16 %v1256
      %v1315 = vunpack.c.l.b16 %v1257
      %v1316 = vunpack.c.l.b16 %v1258
      %v1317 = vunpack.c.l.b16 %v1259
      %v1318 = vpack.c.b16 %v1310, %v1309
      %v1319 = vpack.c.b16 %v1312, %v1311
      %v1320 = vpack.c.b16 %v1314, %v1313
      %v1321 = vpack.c.b16 %v1316, %v1315
      %v1322 = vpack.c.b16 %v1317, %v1317
      %vm1327 = vcmask 588800
      %v1329 = vsel %vm1327, %v1292, 0
      %v1332 = vsel %vm1327, %v1293, 0
      %v1335 = vsel %vm1327, %v1294, 0
      %v1338 = vsel %vm1327, %v1295, 0
      %v1341 = vsel %vm1327, %v1296, 0
      %v1344 = vsel %vm1327, %v1297, 0
      %v1347 = vsel %vm1327, %v1298, 0
      %v1350 = vsel %vm1327, %v1299, 0
      %vm1352 = vcmask 1043456
      %v1354 = vsel %vm1352, %v1322, 0
      %1356 = vmatprep.subr.bf16.mxu0 0
      %1357 = vmatpush1.bf16.msra.mxu0 %v1318
      %1358 = vmatprep.subr.bf16.mxu0 0
      %1359 = vmatpush1.bf16.msra.mxu0 %v1319
      %1360 = vmatprep.subr.bf16.mxu0 0
      %1361 = vmatpush1.bf16.msra.mxu0 %v1320
      %1362 = vmatprep.subr.bf16.mxu0 0
      %1363 = vmatpush1.bf16.msra.mxu0 %v1321
      %1364 = vmatprep.subr.bf16.mxu0 0
      %1365 = vmatpush1.bf16.msra.mxu0 %v1354
      %1366 = vmatprep.subr.bf16.mxu0 0
      %1367 = vmatpush1.bf16.msra.mxu0 0
      %1368 = vmatprep.subr.bf16.mxu0 0
      %1369 = vmatpush1.bf16.msra.mxu0 0
      %1370 = vmatprep.subr.bf16.mxu0 0
      %1371 = vmatpush1.bf16.msra.mxu0 0
      %1372 = vmatprep.subr.bf16.mxu0 0
      %1373 = vmatpush1.bf16.msra.mxu0 0
      %1374 = vmatprep.subr.bf16.mxu0 0
      %1375 = vmatpush1.bf16.msra.mxu0 0
      %1376 = vmatprep.subr.bf16.mxu0 0
      %1377 = vmatpush1.bf16.msra.mxu0 0
      %1378 = vmatprep.subr.bf16.mxu0 0
      %1379 = vmatpush1.bf16.msra.mxu0 0
      %1380 = vmatprep.subr.bf16.mxu0 0
      %1381 = vmatpush1.bf16.msra.mxu0 0
      %1382 = vmatprep.subr.bf16.mxu0 0
      %1383 = vmatpush1.bf16.msra.mxu0 0
      %1384 = vmatprep.subr.bf16.mxu0 0
      %1385 = vmatpush1.bf16.msra.mxu0 0
      %1386 = vmatprep.subr.bf16.mxu0 0
      %1387 = vmatpush1.bf16.msra.mxu0 0
      %1388 = vmatprep.mubr.bf16.mxu0 0
      %1389 = vmatmul.mubr.bf16.gmra.mrb[0].mxu0 %v1329
      %v1390 = vpop.f32.mrb[0].mxu0
      %v1391 = vadd.f32 0.0, %v1390
      %v1392 = vpop.f32.mrb[0].mxu0
      %v1393 = vpop.f32.mrb[0].mxu0
      %v1394 = vadd.f32 0.0, %v1393
      %v1395 = vpop.f32.mrb[0].mxu0
      %1396 = vmatprep.mubr.bf16.mxu0 0
      %1397 = vmatmul.mubr.bf16.gmra.mrb[0].mxu0 %v1332
      %v1398 = vpop.f32.mrb[0].mxu0
      %v1399 = vadd.f32 0.0, %v1398
      %v1400 = vpop.f32.mrb[0].mxu0
      %v1401 = vpop.f32.mrb[0].mxu0
      %v1402 = vadd.f32 0.0, %v1401
      %v1403 = vpop.f32.mrb[0].mxu0
      %1404 = vmatprep.mubr.bf16.mxu0 0
      %1405 = vmatmul.mubr.bf16.gmra.mrb[0].mxu0 %v1335
      %v1406 = vpop.f32.mrb[0].mxu0
      %v1407 = vadd.f32 0.0, %v1406
      %v1408 = vpop.f32.mrb[0].mxu0
      %v1409 = vpop.f32.mrb[0].mxu0
      %v1410 = vadd.f32 0.0, %v1409
      %v1411 = vpop.f32.mrb[0].mxu0
      %1412 = vmatprep.mubr.bf16.mxu0 0
      %1413 = vmatmul.mubr.bf16.gmra.mrb[0].mxu0 %v1338
      %v1414 = vpop.f32.mrb[0].mxu0
      %v1415 = vadd.f32 0.0, %v1414
      %v1416 = vpop.f32.mrb[0].mxu0
      %v1417 = vpop.f32.mrb[0].mxu0
      %v1418 = vadd.f32 0.0, %v1417
      %v1419 = vpop.f32.mrb[0].mxu0
      %1420 = vmatprep.mubr.bf16.mxu0 0
      %1421 = vmatmul.mubr.bf16.gmra.mrb[0].mxu0 %v1341
      %v1422 = vpop.f32.mrb[0].mxu0
      %v1423 = vadd.f32 0.0, %v1422
      %v1424 = vpop.f32.mrb[0].mxu0
      %v1425 = vpop.f32.mrb[0].mxu0
      %v1426 = vadd.f32 0.0, %v1425
      %v1427 = vpop.f32.mrb[0].mxu0
      %1428 = vmatprep.mubr.bf16.mxu0 0
      %1429 = vmatmul.mubr.bf16.gmra.mrb[0].mxu0 %v1344
      %v1430 = vpop.f32.mrb[0].mxu0
      %v1431 = vadd.f32 0.0, %v1430
      %v1432 = vpop.f32.mrb[0].mxu0
      %v1433 = vpop.f32.mrb[0].mxu0
      %v1434 = vadd.f32 0.0, %v1433
      %v1435 = vpop.f32.mrb[0].mxu0
      %1436 = vmatprep.mubr.bf16.mxu0 0
      %1437 = vmatmul.mubr.bf16.gmra.mrb[0].mxu0 %v1347
      %v1438 = vpop.f32.mrb[0].mxu0
      %v1439 = vadd.f32 0.0, %v1438
      %v1440 = vpop.f32.mrb[0].mxu0
      %v1441 = vpop.f32.mrb[0].mxu0
      %v1442 = vadd.f32 0.0, %v1441
      %v1443 = vpop.f32.mrb[0].mxu0
      %1444 = vmatprep.mubr.bf16.mxu0 0
      %1445 = vmatmul.mubr.bf16.gmra.mrb[0].mxu0 %v1350
      %v1446 = vpop.f32.mrb[0].mxu0
      %v1447 = vadd.f32 0.0, %v1446
      %v1448 = vpop.f32.mrb[0].mxu0
      %v1449 = vpop.f32.mrb[0].mxu0
      %v1450 = vadd.f32 0.0, %v1449
      %v1451 = vpop.f32.mrb[0].mxu0
      %1452 = vdwg.mxu0
      %v1453 = vsel %vm1020, %v1391, 0.0
      %v1454 = vsel %vm1020, %v1394, 0.0
      %v1455 = vadd.f32 %v1453, %v1454
      %v1456 = vsel %vm1020, %v1399, 0.0
      %v1457 = vadd.f32 %v1455, %v1456
      %v1458 = vsel %vm1020, %v1402, 0.0
      %v1459 = vadd.f32 %v1457, %v1458
      %v1460 = vsel %vm1020, %v1407, 0.0
      %v1461 = vadd.f32 %v1459, %v1460
      %v1462 = vsel %vm1020, %v1410, 0.0
      %v1463 = vadd.f32 %v1461, %v1462
      %v1464 = vsel %vm1020, %v1415, 0.0
      %v1465 = vadd.f32 %v1463, %v1464
      %v1466 = vsel %vm1020, %v1418, 0.0
      %v1467 = vadd.f32 %v1465, %v1466
      %v1468 = vsel %vm1020, %v1423, 0.0
      %v1469 = vadd.f32 %v1467, %v1468
      %v1470 = vsel %vm1020, %v1426, 0.0
      %v1471 = vadd.f32 %v1469, %v1470
      %v1472 = vsel %vm1020, %v1431, 0.0
      %v1473 = vadd.f32 %v1471, %v1472
      %v1474 = vsel %vm1020, %v1434, 0.0
      %v1475 = vadd.f32 %v1473, %v1474
      %v1476 = vsel %vm1020, %v1439, 0.0
      %v1477 = vadd.f32 %v1475, %v1476
      %v1478 = vsel %vm1020, %v1442, 0.0
      %v1479 = vadd.f32 %v1477, %v1478
      %v1480 = vsel %vm1020, %v1447, 0.0
      %v1481 = vadd.f32 %v1479, %v1480
      %v1482 = vsel %vm1020, %v1450, 0.0
      %v1483 = vadd.f32 %v1481, %v1482
      %v1484 = vrot.slane %v1483, 4
      %v1485 = vadd.f32 %v1483, %v1484
      %v1486 = vrot.slane %v1485, 2
      %v1487 = vadd.f32 %v1485, %v1486
      %v1488 = vrot.slane %v1487, 1
      %v1489 = vadd.f32 %v1487, %v1488
      %vm1490 = vcmask 122880
      %1491 = vst.msk [vmem:[%s219] sm:$0x1] %vm1490, %v1489
      %v1492 = vmul.f32 %v1391, %v1391
      %v1493 = vmul.f32 %v1394, %v1394
      %v1494 = vmul.f32 %v1399, %v1399
      %v1495 = vmul.f32 %v1402, %v1402
      %v1496 = vmul.f32 %v1407, %v1407
      %v1497 = vmul.f32 %v1410, %v1410
      %v1498 = vmul.f32 %v1415, %v1415
      %v1499 = vmul.f32 %v1418, %v1418
      %v1500 = vmul.f32 %v1423, %v1423
      %v1501 = vmul.f32 %v1426, %v1426
      %v1502 = vmul.f32 %v1431, %v1431
      %v1503 = vmul.f32 %v1434, %v1434
      %v1504 = vmul.f32 %v1439, %v1439
      %v1505 = vmul.f32 %v1442, %v1442
      %v1506 = vmul.f32 %v1447, %v1447
      %v1507 = vmul.f32 %v1450, %v1450
      %v1508 = vsel %vm1020, %v1492, 0.0
      %v1509 = vsel %vm1020, %v1493, 0.0
      %v1510 = vadd.f32 %v1508, %v1509
      %v1511 = vsel %vm1020, %v1494, 0.0
      %v1512 = vadd.f32 %v1510, %v1511
      %v1513 = vsel %vm1020, %v1495, 0.0
      %v1514 = vadd.f32 %v1512, %v1513
      %v1515 = vsel %vm1020, %v1496, 0.0
      %v1516 = vadd.f32 %v1514, %v1515
      %v1517 = vsel %vm1020, %v1497, 0.0
      %v1518 = vadd.f32 %v1516, %v1517
      %v1519 = vsel %vm1020, %v1498, 0.0
      %v1520 = vadd.f32 %v1518, %v1519
      %v1521 = vsel %vm1020, %v1499, 0.0
      %v1522 = vadd.f32 %v1520, %v1521
      %v1523 = vsel %vm1020, %v1500, 0.0
      %v1524 = vadd.f32 %v1522, %v1523
      %v1525 = vsel %vm1020, %v1501, 0.0
      %v1526 = vadd.f32 %v1524, %v1525
      %v1527 = vsel %vm1020, %v1502, 0.0
      %v1528 = vadd.f32 %v1526, %v1527
      %v1529 = vsel %vm1020, %v1503, 0.0
      %v1530 = vadd.f32 %v1528, %v1529
      %v1531 = vsel %vm1020, %v1504, 0.0
      %v1532 = vadd.f32 %v1530, %v1531
      %v1533 = vsel %vm1020, %v1505, 0.0
      %v1534 = vadd.f32 %v1532, %v1533
      %v1535 = vsel %vm1020, %v1506, 0.0
      %v1536 = vadd.f32 %v1534, %v1535
      %v1537 = vsel %vm1020, %v1507, 0.0
      %v1538 = vadd.f32 %v1536, %v1537
      %v1539 = vrot.slane %v1538, 4
      %v1540 = vadd.f32 %v1538, %v1539
      %v1541 = vrot.slane %v1540, 2
      %v1542 = vadd.f32 %v1540, %v1541
      %v1543 = vrot.slane %v1542, 1
      %v1544 = vadd.f32 %v1542, %v1543
      %1545 = vst.msk [vmem:[%s222] sm:$0x1] %vm1490, %v1544
      %1546 = vst.msk [vmem:[%s215] sm:$0xff] %vm224, %v1391
      %1547 = vst.msk [vmem:[%s215 + $0x10] sm:$0xff] %vm224, %v1394
      %1548 = vst.msk [vmem:[%s215 + $0x20] sm:$0xff] %vm224, %v1399
      %1549 = vst.msk [vmem:[%s215 + $0x30] sm:$0xff] %vm224, %v1402
      %1550 = vst.msk [vmem:[%s215 + $0x40] sm:$0xff] %vm224, %v1407
      %1551 = vst.msk [vmem:[%s215 + $0x50] sm:$0xff] %vm224, %v1410
      %1552 = vst.msk [vmem:[%s215 + $0x60] sm:$0xff] %vm224, %v1415
      %1553 = vst.msk [vmem:[%s215 + $0x70] sm:$0xff] %vm224, %v1418
      %1554 = vst.msk [vmem:[%s215 + $0x80] sm:$0xff] %vm224, %v1423
      %1555 = vst.msk [vmem:[%s215 + $0x90] sm:$0xff] %vm224, %v1426
      %1556 = vst.msk [vmem:[%s215 + $0xa0] sm:$0xff] %vm224, %v1431
      %1557 = vst.msk [vmem:[%s215 + $0xb0] sm:$0xff] %vm224, %v1434
      %1558 = vst.msk [vmem:[%s215 + $0xc0] sm:$0xff] %vm224, %v1439
      %1559 = vst.msk [vmem:[%s215 + $0xd0] sm:$0xff] %vm224, %v1442
      %1560 = vst.msk [vmem:[%s215 + $0xe0] sm:$0xff] %vm224, %v1447
      %1561 = vst.msk [vmem:[%s215 + $0xf0] sm:$0xff] %vm224, %v1450
      %1578 = vrot.lane.b32.xlu0 %v1391, 120
      %v1579 = vpop.permute.xlu0 %1578
      %1580 = vrot.lane.b32.xlu0 %v1394, 120
      %v1581 = vpop.permute.xlu0 %1580
      %1582 = vrot.lane.b32.xlu0 %v1399, 120
      %v1583 = vpop.permute.xlu0 %1582
      %1584 = vrot.lane.b32.xlu0 %v1402, 120
      %v1585 = vpop.permute.xlu0 %1584
      %1586 = vrot.lane.b32.xlu0 %v1407, 120
      %v1587 = vpop.permute.xlu0 %1586
      %1588 = vrot.lane.b32.xlu0 %v1410, 120
      %v1589 = vpop.permute.xlu0 %1588
      %1590 = vrot.lane.b32.xlu0 %v1415, 120
      %v1591 = vpop.permute.xlu0 %1590
      %1592 = vrot.lane.b32.xlu0 %v1418, 120
      %v1593 = vpop.permute.xlu0 %1592
      %1594 = vrot.lane.b32.xlu0 %v1423, 120
      %v1595 = vpop.permute.xlu0 %1594
      %1596 = vrot.lane.b32.xlu0 %v1426, 120
      %v1597 = vpop.permute.xlu0 %1596
      %1598 = vrot.lane.b32.xlu0 %v1431, 120
      %v1599 = vpop.permute.xlu0 %1598
      %1600 = vrot.lane.b32.xlu0 %v1434, 120
      %v1601 = vpop.permute.xlu0 %1600
      %1602 = vrot.lane.b32.xlu0 %v1439, 120
      %v1603 = vpop.permute.xlu0 %1602
      %1604 = vrot.lane.b32.xlu0 %v1442, 120
      %v1605 = vpop.permute.xlu0 %1604
      %1606 = vrot.lane.b32.xlu0 %v1447, 120
      %v1607 = vpop.permute.xlu0 %1606
      %1608 = vrot.lane.b32.xlu0 %v1450, 120
      %v1609 = vpop.permute.xlu0 %1608
      %s1626 = scalar_lea.vmem %s215, 8
      %1627 = vst.msk [vmem:[%s1626] sm:$0xff] %vm224, %v1579
      %1628 = vst.msk [vmem:[%s1626 + $0x10] sm:$0xff] %vm224, %v1581
      %1629 = vst.msk [vmem:[%s1626 + $0x20] sm:$0xff] %vm224, %v1583
      %1630 = vst.msk [vmem:[%s1626 + $0x30] sm:$0xff] %vm224, %v1585
      %1631 = vst.msk [vmem:[%s1626 + $0x40] sm:$0xff] %vm224, %v1587
      %1632 = vst.msk [vmem:[%s1626 + $0x50] sm:$0xff] %vm224, %v1589
      %1633 = vst.msk [vmem:[%s1626 + $0x60] sm:$0xff] %vm224, %v1591
      %1634 = vst.msk [vmem:[%s1626 + $0x70] sm:$0xff] %vm224, %v1593
      %1635 = vst.msk [vmem:[%s1626 + $0x80] sm:$0xff] %vm224, %v1595
      %1636 = vst.msk [vmem:[%s1626 + $0x90] sm:$0xff] %vm224, %v1597
      %1637 = vst.msk [vmem:[%s1626 + $0xa0] sm:$0xff] %vm224, %v1599
      %1638 = vst.msk [vmem:[%s1626 + $0xb0] sm:$0xff] %vm224, %v1601
      %1639 = vst.msk [vmem:[%s1626 + $0xc0] sm:$0xff] %vm224, %v1603
      %1640 = vst.msk [vmem:[%s1626 + $0xd0] sm:$0xff] %vm224, %v1605
      %1641 = vst.msk [vmem:[%s1626 + $0xe0] sm:$0xff] %vm224, %v1607
      %1642 = vst.msk [vmem:[%s1626 + $0xf0] sm:$0xff] %vm224, %v1609
      %s1643 = smul.u32 2, %s16
      %p1644 = scmp.lt.s32.totalorder %s1643, 3
      %s1645 = scalar_select %p1644, %s1643, 3
      %s1646 = smul.addr %s1645, 16
      %s1647 = smul.addr %s1646, 8
      %s1648 = scalar_lea.vmem %s2, %s1647
      %p1649 = scmp.lt.s32.totalorder %s16, 1
      %s1650 = scalar_select %p1649, %s16, 1
      %s1651 = scalar_lea.vmem %s3, %s1650
      %p1652 = scmp.lt.s32.totalorder %s16, 1
      %s1653 = scalar_select %p1652, %s16, 1
      %s1654 = scalar_lea.vmem %s4, %s1653
      // Predicated region
      $region29: #{upsample_forward.2} parent=27 // pred_check
        %p1655 = pneg %p81
      $region30: #{upsample_forward.2} parent=27 // pred_check_branch
        %1657 = sbr.rel (%p1655) target = $region32
      $region31: #{upsample_forward.2} parent=27 // pred_region
        %s1658 = smul.u32 2, %s16
      $region32: #{upsample_forward.2} parent=27 // pred_fallthru
        _
      // Predicated region
      $region33: #{upsample_forward.2} parent=27 // pred_check
        %p1659 = pneg %p107
      $region34: #{upsample_forward.2} parent=27 // pred_check_branch
        %1661 = sbr.rel (%p1659) target = $region36
      $region35: #{upsample_forward.2} parent=27 // pred_region
        _
      $region36: #{upsample_forward.2} parent=27 // pred_fallthru
        _
      // Predicated region
      $region37: #{upsample_forward.2} parent=27 // pred_check
        %p1662 = pneg %p133
      $region38: #{upsample_forward.2} parent=27 // pred_check_branch
        %1664 = sbr.rel (%p1662) target = $region40
      $region39: #{upsample_forward.2} parent=27 // pred_region
        _
      $region40: #{upsample_forward.2} parent=27 // pred_fallthru
        _
    $region28: #{upsample_forward.2} parent=5 // pred_fallthru
      _
    %p1665 = scmp.le.s32.totalorder 2, %s11
    // Predicated region
    $region41: #{upsample_forward.2} parent=5 // pred_check
      %p1666 = pneg %p1665
    $region42: #{upsample_forward.2} parent=5 // pred_check_branch
      %1668 = sbr.rel (%p1666) target = $region44
    $region43: #{upsample_forward.2} parent=5 // pred_region
      %s1669 = ssub.s32 %s11, 2
      // Predicated region
      $region45: #{upsample_forward.2} parent=43 // pred_check
        %p1670 = pneg %p87
      $region46: #{upsample_forward.2} parent=43 // pred_check_branch
        %1672 = sbr.rel (%p1670) target = $region48
      $region47: #{upsample_forward.2} parent=43 // pred_region
        %s1673 = smul.u32 2, %s17
        %p1674 = scmp.lt.s32.totalorder %s1673, 3
        %s1675 = scalar_select %p1674, %s1673, 3
        %s1676 = smul.addr %s1675, 16
        %s1677 = smul.addr %s1676, 8
        %s1678 = scalar_lea.vmem %s2, %s1677
      $region48: #{upsample_forward.2} parent=43 // pred_fallthru
        _
      // Predicated region
      $region49: #{upsample_forward.2} parent=43 // pred_check
        %p1679 = pneg %p113
      $region50: #{upsample_forward.2} parent=43 // pred_check_branch
        %1681 = sbr.rel (%p1679) target = $region52
      $region51: #{upsample_forward.2} parent=43 // pred_region
        %p1682 = scmp.lt.s32.totalorder %s17, 1
        %s1683 = scalar_select %p1682, %s17, 1
        %s1684 = scalar_lea.vmem %s3, %s1683
      $region52: #{upsample_forward.2} parent=43 // pred_fallthru
        _
      // Predicated region
      $region53: #{upsample_forward.2} parent=43 // pred_check
        %p1685 = pneg %p139
      $region54: #{upsample_forward.2} parent=43 // pred_check_branch
        %1687 = sbr.rel (%p1685) target = $region56
      $region55: #{upsample_forward.2} parent=43 // pred_region
        %p1688 = scmp.lt.s32.totalorder %s17, 1
        %s1689 = scalar_select %p1688, %s17, 1
        %s1690 = scalar_lea.vmem %s4, %s1689
      $region56: #{upsample_forward.2} parent=43 // pred_fallthru
        _
    $region44: #{upsample_forward.2} parent=5 // pred_fallthru
      _
  $region6: #{upsample_forward.2} parent=0 // loop_footer
    %s15 = sadd.s32 1, %s11
  $region7: #{upsample_forward.2} parent=0 // loop_footer_branch
    %10 = sbr.rel target = $region3
  $region8: #{upsample_forward.2} parent=0 // loop_exit
    _

</llo_original>
